<compile_context>
chip_gen: v7x
topology: tpu7x:2x2x1
jax: 0.10.0
libtpu: 0.0.40
codegen_flags: <defaults>
</compile_context>

<pallas_src>
import jax
import jax.numpy as jnp
from jax.experimental import pallas as pl
from jax.experimental.pallas import tpu as pltpu

# ---- module hyper-parameters (defaults of the PyTorch Teacher) ----
NUM_LEGS = 4
PROPRIO_DIM = 133
EXTERO_DIM = 52
LATENT_EXTERO_DIM = 24
EXTERO_HIDDEN = (80, 60)
PRIVILEGED_DIM = 50
LATENT_PRIV_DIM = 24
PRIV_HIDDEN = (64, 32)
MLP_HIDDEN = (256, 160, 128)
NUM_ACTIONS = 12

NEG_SLOPE = 0.01      # PyTorch nn.LeakyReLU default
HEAD_PAD = 128        # fused (action|value) head padded to 128 lanes -> unmasked vst
BIAS_ROWS = 16        # bias slab rows (sublane-tile padded)
BIAS_LANES = 384      # bias slab lanes (>= widest bias (320), multiple of 128)


def _leaky_relu(x):
    return jnp.where(x > 0, x, NEG_SLOPE * x)


# --------------------------------------------------------------------------------------
# Kernel: one batch-row-block of the full Teacher forward.
# --------------------------------------------------------------------------------------
def teacher_kernel(
    proprio_ref, extero_ref, priv_ref,
    we1, we2, we3,                 # block-diagonal extero encoder (all legs fused)
    wp1, wp2, wp3,                 # privileged encoder
    wl1p, wl1e, wl1v,              # trunk layer-1 weight, pre-split by input group
    wl2, wl3,                      # trunk layers 2, 3
    wh,                            # fused (action | value) head, padded to 128 columns
    bias_ref,                      # (BIAS_ROWS, BIAS_LANES) f32 bias slab
    out_ref,                       # (tb, HEAD_PAD) f32: [pi | value | zero pad]
):
    def linear(x, w_ref, brow):
        w = w_ref[...]
        acc = jnp.dot(x.astype(w.dtype), w, preferred_element_type=jnp.float32)
        return acc + bias_ref[brow:brow + 1, 0:w.shape[-1]]

    # ---- extero encoder: all legs in one pass (block-diagonal weights) ----
    e = _leaky_relu(linear(extero_ref[...], we1, 0))
    e = _leaky_relu(linear(e, we2, 1))
    lat_e = linear(e, we3, 2)                       # (tb, num_legs * latent_extero)

    # ---- privileged encoder ----
    p = _leaky_relu(linear(priv_ref[...], wp1, 3))
    p = _leaky_relu(linear(p, wp2, 4))
    lat_p = linear(p, wp3, 5)                       # (tb, latent_priv)

    # ---- trunk: concat expressed as exact sum of aligned partial matmuls ----
    wl1e_w = wl1e[...]
    wl1v_w = wl1v[...]
    h = linear(proprio_ref[...], wl1p, 6)           # includes bl1 once
    h = h + jnp.dot(lat_e.astype(wl1e_w.dtype), wl1e_w, preferred_element_type=jnp.float32)
    h = h + jnp.dot(lat_p.astype(wl1v_w.dtype), wl1v_w, preferred_element_type=jnp.float32)
    h = _leaky_relu(h)
    h = _leaky_relu(linear(h, wl2, 7))
    logits = linear(h, wl3, 8)                      # (tb, 128)

    # ---- fused action/value heads ----
    act = _leaky_relu(logits)
    out_ref[...] = linear(act, wh, 9)               # (tb, 128)


# --------------------------------------------------------------------------------------
# Wrapper-side weight packing (trace-time; no in-kernel relayout work).
# --------------------------------------------------------------------------------------
def _block_diag(w, n):
    k, m = w.shape
    out = jnp.zeros((n * k, n * m), w.dtype)
    for i in range(n):
        out = out.at[i * k:(i + 1) * k, i * m:(i + 1) * m].set(w)
    return out


def _pack_biases(rows):
    slab = jnp.zeros((BIAS_ROWS, BIAS_LANES), jnp.float32)
    for r, vec in enumerate(rows):
        v = jnp.asarray(vec, jnp.float32).reshape(-1)
        assert v.shape[0] <= BIAS_LANES
        slab = slab.at[r, :v.shape[0]].set(v)
    return slab


def prepare_operands(params, *, num_legs=NUM_LEGS, param_dtype=jnp.bfloat16):
    cast = lambda w: jnp.asarray(w, param_dtype)

    we1 = cast(_block_diag(params["we1"], num_legs))     # (208, 320)
    we2 = cast(_block_diag(params["we2"], num_legs))     # (320, 240)
    we3 = cast(_block_diag(params["we3"], num_legs))     # (240,  96)
    wp1, wp2, wp3 = cast(params["wp1"]), cast(params["wp2"]), cast(params["wp3"])

    wl1 = params["wl1"]                                   # (253, 256)
    po = PROPRIO_DIM
    eo = po + num_legs * LATENT_EXTERO_DIM
    wl1p, wl1e, wl1v = cast(wl1[:po]), cast(wl1[po:eo]), cast(wl1[eo:])
    wl2, wl3 = cast(params["wl2"]), cast(params["wl3"])

    num_actions = params["wa"].shape[1]
    assert num_actions + 1 <= HEAD_PAD
    wh = jnp.concatenate([params["wa"], params["wv"]], axis=1)          # (128, A+1)
    wh = cast(jnp.pad(wh, ((0, 0), (0, HEAD_PAD - (num_actions + 1)))))  # (128, 128)

    bias_slab = _pack_biases([
        jnp.tile(params["be1"], (1, num_legs)),
        jnp.tile(params["be2"], (1, num_legs)),
        jnp.tile(params["be3"], (1, num_legs)),
        params["bp1"], params["bp2"], params["bp3"],
        params["bl1"], params["bl2"], params["bl3"],
        jnp.concatenate([params["ba"], params["bv"]], axis=1),
    ])
    weights = (we1, we2, we3, wp1, wp2, wp3, wl1p, wl1e, wl1v, wl2, wl3, wh)
    return weights, bias_slab, num_actions


def teacher_forward(proprio, extero, privileged, params, *,
                    return_value_head=False, param_dtype=jnp.bfloat16, block_rows=256):
    b, _ = proprio.shape
    _, num_legs, extero_dim = extero.shape
    weights, bias_slab, num_actions = prepare_operands(
        params, num_legs=num_legs, param_dtype=param_dtype)

    # inputs: cast + flatten extero features (leg-major), matching rearrange 'b n d -> b (n d)'
    proprio_x = proprio.astype(param_dtype)
    extero_x = extero.reshape(b, num_legs * extero_dim).astype(param_dtype)
    priv_x = privileged.astype(param_dtype)

    # batch blocking (row block multiple of 8 when gridded)
    if b <= block_rows:
        tb, bp = b, b
    else:
        tb = block_rows
        bp = pl.cdiv(b, tb) * tb
    if bp != b:
        pad = ((0, bp - b), (0, 0))
        proprio_x = jnp.pad(proprio_x, pad)
        extero_x = jnp.pad(extero_x, pad)
        priv_x = jnp.pad(priv_x, pad)
    grid = (bp // tb,)

    def row_spec(arr):
        return pl.BlockSpec((tb, arr.shape[1]), lambda i: (i, 0))

    def const_spec(arr):
        return pl.BlockSpec(arr.shape, lambda i: (0, 0))

    in_specs = [row_spec(proprio_x), row_spec(extero_x), row_spec(priv_x)]
    in_specs += [const_spec(w) for w in weights]
    in_specs += [const_spec(bias_slab)]
    out_spec = pl.BlockSpec((tb, HEAD_PAD), lambda i: (i, 0))

    itemsize = jnp.dtype(param_dtype).itemsize
    weight_bytes = sum(int(w.size) * itemsize for w in weights) + int(bias_slab.size) * 4
    io_bytes = (bp * (proprio_x.shape[1] + extero_x.shape[1] + priv_x.shape[1]) * itemsize
                + bp * HEAD_PAD * 4)
    flops = 2 * bp * sum(int(w.shape[0]) * int(w.shape[1]) for w in weights)

    out = pl.pallas_call(
        teacher_kernel,
        out_shape=jax.ShapeDtypeStruct((bp, HEAD_PAD), jnp.float32),
        grid=grid,
        in_specs=in_specs,
        out_specs=out_spec,
        compiler_params=pltpu.CompilerParams(dimension_semantics=("parallel",)),
        cost_estimate=pl.CostEstimate(flops=int(flops), transcendentals=0,
                                      bytes_accessed=int(weight_bytes + io_bytes)),
    )(proprio_x, extero_x, priv_x, *weights, bias_slab)

    pi = out[:b, :num_actions]
    if not return_value_head:
        return pi
    return pi, out[:b, num_actions]   # value head: Rearrange('... 1 -> ...')


# ----------------- deterministic parameter init (PyTorch-style uniform) -----------------
def _init_linear(key, fan_in, fan_out):
    kw, kb = jax.random.split(key)
    bound = 1.0 / jnp.sqrt(float(fan_in))
    w = jax.random.uniform(kw, (fan_in, fan_out), jnp.float32, -bound, bound)
    b = jax.random.uniform(kb, (1, fan_out), jnp.float32, -bound, bound)
    return w, b


def make_params(key, num_actions=NUM_ACTIONS):
    dims_e = (EXTERO_DIM, *EXTERO_HIDDEN, LATENT_EXTERO_DIM)
    dims_p = (PRIVILEGED_DIM, *PRIV_HIDDEN, LATENT_PRIV_DIM)
    trunk_in = LATENT_EXTERO_DIM * NUM_LEGS + LATENT_PRIV_DIM + PROPRIO_DIM
    dims_l = (trunk_in, *MLP_HIDDEN)

    keys = jax.random.split(key, 11)
    p = {}
    p["we1"], p["be1"] = _init_linear(keys[0], dims_e[0], dims_e[1])
    p["we2"], p["be2"] = _init_linear(keys[1], dims_e[1], dims_e[2])
    p["we3"], p["be3"] = _init_linear(keys[2], dims_e[2], dims_e[3])
    p["wp1"], p["bp1"] = _init_linear(keys[3], dims_p[0], dims_p[1])
    p["wp2"], p["bp2"] = _init_linear(keys[4], dims_p[1], dims_p[2])
    p["wp3"], p["bp3"] = _init_linear(keys[5], dims_p[2], dims_p[3])
    p["wl1"], p["bl1"] = _init_linear(keys[6], dims_l[0], dims_l[1])
    p["wl2"], p["bl2"] = _init_linear(keys[7], dims_l[1], dims_l[2])
    p["wl3"], p["bl3"] = _init_linear(keys[8], dims_l[2], dims_l[3])
    p["wa"], p["ba"] = _init_linear(keys[9], MLP_HIDDEN[-1], num_actions)
    p["wv"], p["bv"] = _init_linear(keys[10], MLP_HIDDEN[-1], 1)
    return p


# ----------------- pure-JAX reference (mirrors the PyTorch forward) -----------------
def teacher_ref(proprio, extero, privileged, p, compute_dtype=jnp.float32):
    # With compute_dtype=float32 this is exactly the PyTorch forward; with bfloat16 it
    # mirrors the kernel's precision policy (bf16 matmul inputs, f32 accumulation).
    cast = lambda x: x.astype(compute_dtype)

    def lin(x, w, bias):
        return jnp.dot(cast(x), cast(w), preferred_element_type=jnp.float32) + bias

    def mlp3(x, w1, b1, w2, b2, w3, b3):
        h = _leaky_relu(lin(x, w1, b1))
        h = _leaky_relu(lin(h, w2, b2))
        return lin(h, w3, b3)

    lat_e = mlp3(extero, p["we1"], p["be1"], p["we2"], p["be2"], p["we3"], p["be3"])
    lat_e = lat_e.reshape(lat_e.shape[0], -1)
    lat_p = mlp3(privileged, p["wp1"], p["bp1"], p["wp2"], p["bp2"], p["wp3"], p["bp3"])
    latent = jnp.concatenate((proprio, lat_e, lat_p), axis=-1)
    logits = mlp3(latent, p["wl1"], p["bl1"], p["wl2"], p["bl2"], p["wl3"], p["bl3"])
    act = _leaky_relu(logits)
    pi = lin(act, p["wa"], p["ba"])
    val = lin(act, p["wv"], p["bv"])[:, 0]
    return pi, val


if __name__ == "__main__":
    key = jax.random.PRNGKey(0)
    k_param, k_pro, k_ext, k_prv = jax.random.split(key, 4)

    batch = 2
    params = make_params(k_param, NUM_ACTIONS)
    proprio = jax.random.normal(k_pro, (batch, PROPRIO_DIM), jnp.float32)
    extero = jax.random.normal(k_ext, (batch, NUM_LEGS, EXTERO_DIM), jnp.float32)
    privileged = jax.random.normal(k_prv, (batch, PRIVILEGED_DIM), jnp.float32)

    # 1) exact-semantics check with f32 weights (matches the PyTorch module numerics)
    pi32, val32 = teacher_forward(proprio, extero, privileged, params,
                                  return_value_head=True, param_dtype=jnp.float32)
    jax.block_until_ready((pi32, val32))
    pi_ref32, val_ref32 = teacher_ref(proprio, extero, privileged, params, jnp.float32)
    assert pi32.shape == (batch, NUM_ACTIONS) and val32.shape == (batch,)
    assert jnp.allclose(pi32, pi_ref32, atol=2e-3, rtol=2e-3)
    assert jnp.allclose(val32, val_ref32, atol=2e-3, rtol=2e-3)

    # 2) default fast path: bf16 weights/activations at the MXU, f32 accumulation
    pi_bf, val_bf = teacher_forward(proprio, extero, privileged, params,
                                    return_value_head=True)
    jax.block_until_ready((pi_bf, val_bf))
    pi_refb, val_refb = teacher_ref(proprio, extero, privileged, params, jnp.bfloat16)
    assert jnp.allclose(pi_bf, pi_refb, atol=2e-2, rtol=2e-2)
    assert jnp.allclose(val_bf, val_refb, atol=2e-2, rtol=2e-2)

    # 3) large-batch path: batch-blocked 1-D "parallel" grid with padding (500 -> 2x256)
    big = 500
    kb_p, kb_e, kb_v = jax.random.split(jax.random.PRNGKey(1), 3)
    proprio_b = jax.random.normal(kb_p, (big, PROPRIO_DIM), jnp.float32)
    extero_b = jax.random.normal(kb_e, (big, NUM_LEGS, EXTERO_DIM), jnp.float32)
    priv_b = jax.random.normal(kb_v, (big, PRIVILEGED_DIM), jnp.float32)
    pi_big, val_big = teacher_forward(proprio_b, extero_b, priv_b, params,
                                      return_value_head=True)
    jax.block_until_ready((pi_big, val_big))
    pi_refbig, val_refbig = teacher_ref(proprio_b, extero_b, priv_b, params, jnp.bfloat16)
    assert pi_big.shape == (big, NUM_ACTIONS) and val_big.shape == (big,)
    assert jnp.allclose(pi_big, pi_refbig, atol=2e-2, rtol=2e-2)
    assert jnp.allclose(val_big, val_refbig, atol=2e-2, rtol=2e-2)

    print("KERNEL_OK")
</pallas_src>

<mosaic_0001>
module attributes {stable_mosaic.version = 11 : i64} {
  func.func @teacher_kernel(%arg0: i32, %arg1: memref<2x133xf32, #tpu.memory_space<vmem>>, %arg2: memref<2x208xf32, #tpu.memory_space<vmem>>, %arg3: memref<2x50xf32, #tpu.memory_space<vmem>>, %arg4: memref<208x320xf32, #tpu.memory_space<vmem>>, %arg5: memref<320x240xf32, #tpu.memory_space<vmem>>, %arg6: memref<240x96xf32, #tpu.memory_space<vmem>>, %arg7: memref<50x64xf32, #tpu.memory_space<vmem>>, %arg8: memref<64x32xf32, #tpu.memory_space<vmem>>, %arg9: memref<32x24xf32, #tpu.memory_space<vmem>>, %arg10: memref<133x256xf32, #tpu.memory_space<vmem>>, %arg11: memref<96x256xf32, #tpu.memory_space<vmem>>, %arg12: memref<24x256xf32, #tpu.memory_space<vmem>>, %arg13: memref<256x160xf32, #tpu.memory_space<vmem>>, %arg14: memref<160x128xf32, #tpu.memory_space<vmem>>, %arg15: memref<128x128xf32, #tpu.memory_space<vmem>>, %arg16: memref<16x384xf32, #tpu.memory_space<vmem>>, %arg17: memref<2x128xf32, #tpu.memory_space<vmem>>) attributes {dimension_semantics = [#tpu.dimension_semantics<parallel>], iteration_bounds = array<i64: 1>, scalar_prefetch = 0 : i64, scratch_operands = 0 : i64, tpu.core_type = #tpu.core_type<tc>, window_params = [{transform_indices = @transform_0, window_bounds = array<i64: 2, 133>}, {transform_indices = @transform_1, window_bounds = array<i64: 2, 208>}, {transform_indices = @transform_2, window_bounds = array<i64: 2, 50>}, {pipeline_mode = #tpu.pipeline_mode<synchronous>, transform_indices = @transform_3, window_bounds = array<i64: 208, 320>}, {pipeline_mode = #tpu.pipeline_mode<synchronous>, transform_indices = @transform_4, window_bounds = array<i64: 320, 240>}, {pipeline_mode = #tpu.pipeline_mode<synchronous>, transform_indices = @transform_5, window_bounds = array<i64: 240, 96>}, {pipeline_mode = #tpu.pipeline_mode<synchronous>, transform_indices = @transform_6, window_bounds = array<i64: 50, 64>}, {pipeline_mode = #tpu.pipeline_mode<synchronous>, transform_indices = @transform_7, window_bounds = array<i64: 64, 32>}, {pipeline_mode = #tpu.pipeline_mode<synchronous>, transform_indices = @transform_8, window_bounds = array<i64: 32, 24>}, {pipeline_mode = #tpu.pipeline_mode<synchronous>, transform_indices = @transform_9, window_bounds = array<i64: 133, 256>}, {pipeline_mode = #tpu.pipeline_mode<synchronous>, transform_indices = @transform_10, window_bounds = array<i64: 96, 256>}, {pipeline_mode = #tpu.pipeline_mode<synchronous>, transform_indices = @transform_11, window_bounds = array<i64: 24, 256>}, {pipeline_mode = #tpu.pipeline_mode<synchronous>, transform_indices = @transform_12, window_bounds = array<i64: 256, 160>}, {pipeline_mode = #tpu.pipeline_mode<synchronous>, transform_indices = @transform_13, window_bounds = array<i64: 160, 128>}, {pipeline_mode = #tpu.pipeline_mode<synchronous>, transform_indices = @transform_14, window_bounds = array<i64: 128, 128>}, {pipeline_mode = #tpu.pipeline_mode<synchronous>, transform_indices = @transform_15, window_bounds = array<i64: 16, 384>}, {transform_indices = @transform_16, window_bounds = array<i64: 2, 128>}]} {
    %c0 = arith.constant 0 : index
    %c0_0 = arith.constant 0 : index
    %0 = vector.load %arg2[%c0, %c0_0] : memref<2x208xf32, #tpu.memory_space<vmem>>, vector<2x208xf32>
    %c0_1 = arith.constant 0 : index
    %c0_2 = arith.constant 0 : index
    %1 = vector.load %arg4[%c0_1, %c0_2] : memref<208x320xf32, #tpu.memory_space<vmem>>, vector<208x320xf32>
    %cst = arith.constant dense<0.000000e+00> : vector<2x320xf32>
    %2 = tpu.matmul %0, %1, %cst {dimension_numbers = #tpu.dot_dimension_numbers<[1], [0], [0], [1], [0, 0, 1, 1], [], []>} : vector<2x208xf32>, vector<208x320xf32>, vector<2x320xf32> -> vector<2x320xf32>
    %c0_3 = arith.constant 0 : index
    %c0_4 = arith.constant 0 : index
    %3 = vector.load %arg16[%c0_3, %c0_4] : memref<16x384xf32, #tpu.memory_space<vmem>>, vector<1x320xf32>
    %4 = vector.broadcast %3 : vector<1x320xf32> to vector<2x320xf32>
    %5 = arith.addf %2, %4 : vector<2x320xf32>
    %cst_5 = arith.constant 0.000000e+00 : f32
    %6 = vector.broadcast %cst_5 : f32 to vector<2x320xf32>
    %7 = arith.cmpf ogt, %5, %6 : vector<2x320xf32>
    %cst_6 = arith.constant 0.00999999977 : f32
    %8 = vector.broadcast %cst_6 : f32 to vector<2x320xf32>
    %9 = arith.mulf %8, %5 : vector<2x320xf32>
    %10 = arith.select %7, %5, %9 : vector<2x320xi1>, vector<2x320xf32>
    %c0_7 = arith.constant 0 : index
    %c0_8 = arith.constant 0 : index
    %11 = vector.load %arg5[%c0_7, %c0_8] : memref<320x240xf32, #tpu.memory_space<vmem>>, vector<320x240xf32>
    %cst_9 = arith.constant dense<0.000000e+00> : vector<2x240xf32>
    %12 = tpu.matmul %10, %11, %cst_9 {dimension_numbers = #tpu.dot_dimension_numbers<[1], [0], [0], [1], [0, 0, 1, 1], [], []>} : vector<2x320xf32>, vector<320x240xf32>, vector<2x240xf32> -> vector<2x240xf32>
    %c1 = arith.constant 1 : index
    %c0_10 = arith.constant 0 : index
    %13 = vector.load %arg16[%c1, %c0_10] : memref<16x384xf32, #tpu.memory_space<vmem>>, vector<1x240xf32>
    %14 = vector.broadcast %13 : vector<1x240xf32> to vector<2x240xf32>
    %15 = arith.addf %12, %14 : vector<2x240xf32>
    %cst_11 = arith.constant 0.000000e+00 : f32
    %16 = vector.broadcast %cst_11 : f32 to vector<2x240xf32>
    %17 = arith.cmpf ogt, %15, %16 : vector<2x240xf32>
    %cst_12 = arith.constant 0.00999999977 : f32
    %18 = vector.broadcast %cst_12 : f32 to vector<2x240xf32>
    %19 = arith.mulf %18, %15 : vector<2x240xf32>
    %20 = arith.select %17, %15, %19 : vector<2x240xi1>, vector<2x240xf32>
    %c0_13 = arith.constant 0 : index
    %c0_14 = arith.constant 0 : index
    %21 = vector.load %arg6[%c0_13, %c0_14] : memref<240x96xf32, #tpu.memory_space<vmem>>, vector<240x96xf32>
    %cst_15 = arith.constant dense<0.000000e+00> : vector<2x96xf32>
    %22 = tpu.matmul %20, %21, %cst_15 {dimension_numbers = #tpu.dot_dimension_numbers<[1], [0], [0], [1], [0, 0, 1, 1], [], []>} : vector<2x240xf32>, vector<240x96xf32>, vector<2x96xf32> -> vector<2x96xf32>
    %c2 = arith.constant 2 : index
    %c0_16 = arith.constant 0 : index
    %23 = vector.load %arg16[%c2, %c0_16] : memref<16x384xf32, #tpu.memory_space<vmem>>, vector<1x96xf32>
    %24 = vector.broadcast %23 : vector<1x96xf32> to vector<2x96xf32>
    %25 = arith.addf %22, %24 : vector<2x96xf32>
    %c0_17 = arith.constant 0 : index
    %c0_18 = arith.constant 0 : index
    %26 = vector.load %arg3[%c0_17, %c0_18] : memref<2x50xf32, #tpu.memory_space<vmem>>, vector<2x50xf32>
    %c0_19 = arith.constant 0 : index
    %c0_20 = arith.constant 0 : index
    %27 = vector.load %arg7[%c0_19, %c0_20] : memref<50x64xf32, #tpu.memory_space<vmem>>, vector<50x64xf32>
    %cst_21 = arith.constant dense<0.000000e+00> : vector<2x64xf32>
    %28 = tpu.matmul %26, %27, %cst_21 {dimension_numbers = #tpu.dot_dimension_numbers<[1], [0], [0], [1], [0, 0, 1, 1], [], []>} : vector<2x50xf32>, vector<50x64xf32>, vector<2x64xf32> -> vector<2x64xf32>
    %c3 = arith.constant 3 : index
    %c0_22 = arith.constant 0 : index
    %29 = vector.load %arg16[%c3, %c0_22] : memref<16x384xf32, #tpu.memory_space<vmem>>, vector<1x64xf32>
    %30 = vector.broadcast %29 : vector<1x64xf32> to vector<2x64xf32>
    %31 = arith.addf %28, %30 : vector<2x64xf32>
    %cst_23 = arith.constant 0.000000e+00 : f32
    %32 = vector.broadcast %cst_23 : f32 to vector<2x64xf32>
    %33 = arith.cmpf ogt, %31, %32 : vector<2x64xf32>
    %cst_24 = arith.constant 0.00999999977 : f32
    %34 = vector.broadcast %cst_24 : f32 to vector<2x64xf32>
    %35 = arith.mulf %34, %31 : vector<2x64xf32>
    %36 = arith.select %33, %31, %35 : vector<2x64xi1>, vector<2x64xf32>
    %c0_25 = arith.constant 0 : index
    %c0_26 = arith.constant 0 : index
    %37 = vector.load %arg8[%c0_25, %c0_26] : memref<64x32xf32, #tpu.memory_space<vmem>>, vector<64x32xf32>
    %cst_27 = arith.constant dense<0.000000e+00> : vector<2x32xf32>
    %38 = tpu.matmul %36, %37, %cst_27 {dimension_numbers = #tpu.dot_dimension_numbers<[1], [0], [0], [1], [0, 0, 1, 1], [], []>} : vector<2x64xf32>, vector<64x32xf32>, vector<2x32xf32> -> vector<2x32xf32>
    %c4 = arith.constant 4 : index
    %c0_28 = arith.constant 0 : index
    %39 = vector.load %arg16[%c4, %c0_28] : memref<16x384xf32, #tpu.memory_space<vmem>>, vector<1x32xf32>
    %40 = vector.broadcast %39 : vector<1x32xf32> to vector<2x32xf32>
    %41 = arith.addf %38, %40 : vector<2x32xf32>
    %cst_29 = arith.constant 0.000000e+00 : f32
    %42 = vector.broadcast %cst_29 : f32 to vector<2x32xf32>
    %43 = arith.cmpf ogt, %41, %42 : vector<2x32xf32>
    %cst_30 = arith.constant 0.00999999977 : f32
    %44 = vector.broadcast %cst_30 : f32 to vector<2x32xf32>
    %45 = arith.mulf %44, %41 : vector<2x32xf32>
    %46 = arith.select %43, %41, %45 : vector<2x32xi1>, vector<2x32xf32>
    %c0_31 = arith.constant 0 : index
    %c0_32 = arith.constant 0 : index
    %47 = vector.load %arg9[%c0_31, %c0_32] : memref<32x24xf32, #tpu.memory_space<vmem>>, vector<32x24xf32>
    %cst_33 = arith.constant dense<0.000000e+00> : vector<2x24xf32>
    %48 = tpu.matmul %46, %47, %cst_33 {dimension_numbers = #tpu.dot_dimension_numbers<[1], [0], [0], [1], [0, 0, 1, 1], [], []>} : vector<2x32xf32>, vector<32x24xf32>, vector<2x24xf32> -> vector<2x24xf32>
    %c5 = arith.constant 5 : index
    %c0_34 = arith.constant 0 : index
    %49 = vector.load %arg16[%c5, %c0_34] : memref<16x384xf32, #tpu.memory_space<vmem>>, vector<1x24xf32>
    %50 = vector.broadcast %49 : vector<1x24xf32> to vector<2x24xf32>
    %51 = arith.addf %48, %50 : vector<2x24xf32>
    %c0_35 = arith.constant 0 : index
    %c0_36 = arith.constant 0 : index
    %52 = vector.load %arg11[%c0_35, %c0_36] : memref<96x256xf32, #tpu.memory_space<vmem>>, vector<96x256xf32>
    %c0_37 = arith.constant 0 : index
    %c0_38 = arith.constant 0 : index
    %53 = vector.load %arg12[%c0_37, %c0_38] : memref<24x256xf32, #tpu.memory_space<vmem>>, vector<24x256xf32>
    %c0_39 = arith.constant 0 : index
    %c0_40 = arith.constant 0 : index
    %54 = vector.load %arg1[%c0_39, %c0_40] : memref<2x133xf32, #tpu.memory_space<vmem>>, vector<2x133xf32>
    %c0_41 = arith.constant 0 : index
    %c0_42 = arith.constant 0 : index
    %55 = vector.load %arg10[%c0_41, %c0_42] : memref<133x256xf32, #tpu.memory_space<vmem>>, vector<133x256xf32>
    %cst_43 = arith.constant dense<0.000000e+00> : vector<2x256xf32>
    %56 = tpu.matmul %54, %55, %cst_43 {dimension_numbers = #tpu.dot_dimension_numbers<[1], [0], [0], [1], [0, 0, 1, 1], [], []>} : vector<2x133xf32>, vector<133x256xf32>, vector<2x256xf32> -> vector<2x256xf32>
    %c6 = arith.constant 6 : index
    %c0_44 = arith.constant 0 : index
    %57 = vector.load %arg16[%c6, %c0_44] : memref<16x384xf32, #tpu.memory_space<vmem>>, vector<1x256xf32>
    %58 = vector.broadcast %57 : vector<1x256xf32> to vector<2x256xf32>
    %59 = arith.addf %56, %58 : vector<2x256xf32>
    %cst_45 = arith.constant dense<0.000000e+00> : vector<2x256xf32>
    %60 = tpu.matmul %25, %52, %cst_45 {dimension_numbers = #tpu.dot_dimension_numbers<[1], [0], [0], [1], [0, 0, 1, 1], [], []>} : vector<2x96xf32>, vector<96x256xf32>, vector<2x256xf32> -> vector<2x256xf32>
    %61 = arith.addf %59, %60 : vector<2x256xf32>
    %cst_46 = arith.constant dense<0.000000e+00> : vector<2x256xf32>
    %62 = tpu.matmul %51, %53, %cst_46 {dimension_numbers = #tpu.dot_dimension_numbers<[1], [0], [0], [1], [0, 0, 1, 1], [], []>} : vector<2x24xf32>, vector<24x256xf32>, vector<2x256xf32> -> vector<2x256xf32>
    %63 = arith.addf %61, %62 : vector<2x256xf32>
    %cst_47 = arith.constant 0.000000e+00 : f32
    %64 = vector.broadcast %cst_47 : f32 to vector<2x256xf32>
    %65 = arith.cmpf ogt, %63, %64 : vector<2x256xf32>
    %cst_48 = arith.constant 0.00999999977 : f32
    %66 = vector.broadcast %cst_48 : f32 to vector<2x256xf32>
    %67 = arith.mulf %66, %63 : vector<2x256xf32>
    %68 = arith.select %65, %63, %67 : vector<2x256xi1>, vector<2x256xf32>
    %c0_49 = arith.constant 0 : index
    %c0_50 = arith.constant 0 : index
    %69 = vector.load %arg13[%c0_49, %c0_50] : memref<256x160xf32, #tpu.memory_space<vmem>>, vector<256x160xf32>
    %cst_51 = arith.constant dense<0.000000e+00> : vector<2x160xf32>
    %70 = tpu.matmul %68, %69, %cst_51 {dimension_numbers = #tpu.dot_dimension_numbers<[1], [0], [0], [1], [0, 0, 1, 1], [], []>} : vector<2x256xf32>, vector<256x160xf32>, vector<2x160xf32> -> vector<2x160xf32>
    %c7 = arith.constant 7 : index
    %c0_52 = arith.constant 0 : index
    %71 = vector.load %arg16[%c7, %c0_52] : memref<16x384xf32, #tpu.memory_space<vmem>>, vector<1x160xf32>
    %72 = vector.broadcast %71 : vector<1x160xf32> to vector<2x160xf32>
    %73 = arith.addf %70, %72 : vector<2x160xf32>
    %cst_53 = arith.constant 0.000000e+00 : f32
    %74 = vector.broadcast %cst_53 : f32 to vector<2x160xf32>
    %75 = arith.cmpf ogt, %73, %74 : vector<2x160xf32>
    %cst_54 = arith.constant 0.00999999977 : f32
    %76 = vector.broadcast %cst_54 : f32 to vector<2x160xf32>
    %77 = arith.mulf %76, %73 : vector<2x160xf32>
    %78 = arith.select %75, %73, %77 : vector<2x160xi1>, vector<2x160xf32>
    %c0_55 = arith.constant 0 : index
    %c0_56 = arith.constant 0 : index
    %79 = vector.load %arg14[%c0_55, %c0_56] : memref<160x128xf32, #tpu.memory_space<vmem>>, vector<160x128xf32>
    %cst_57 = arith.constant dense<0.000000e+00> : vector<2x128xf32>
    %80 = tpu.matmul %78, %79, %cst_57 {dimension_numbers = #tpu.dot_dimension_numbers<[1], [0], [0], [1], [0, 0, 1, 1], [], []>} : vector<2x160xf32>, vector<160x128xf32>, vector<2x128xf32> -> vector<2x128xf32>
    %c8 = arith.constant 8 : index
    %c0_58 = arith.constant 0 : index
    %81 = vector.load %arg16[%c8, %c0_58] : memref<16x384xf32, #tpu.memory_space<vmem>>, vector<1x128xf32>
    %82 = vector.broadcast %81 : vector<1x128xf32> to vector<2x128xf32>
    %83 = arith.addf %80, %82 : vector<2x128xf32>
    %cst_59 = arith.constant 0.000000e+00 : f32
    %84 = vector.broadcast %cst_59 : f32 to vector<2x128xf32>
    %85 = arith.cmpf ogt, %83, %84 : vector<2x128xf32>
    %cst_60 = arith.constant 0.00999999977 : f32
    %86 = vector.broadcast %cst_60 : f32 to vector<2x128xf32>
    %87 = arith.mulf %86, %83 : vector<2x128xf32>
    %88 = arith.select %85, %83, %87 : vector<2x128xi1>, vector<2x128xf32>
    %c0_61 = arith.constant 0 : index
    %c0_62 = arith.constant 0 : index
    %89 = vector.load %arg15[%c0_61, %c0_62] : memref<128x128xf32, #tpu.memory_space<vmem>>, vector<128x128xf32>
    %cst_63 = arith.constant dense<0.000000e+00> : vector<2x128xf32>
    %90 = tpu.matmul %88, %89, %cst_63 {dimension_numbers = #tpu.dot_dimension_numbers<[1], [0], [0], [1], [0, 0, 1, 1], [], []>} : vector<2x128xf32>, vector<128x128xf32>, vector<2x128xf32> -> vector<2x128xf32>
    %c9 = arith.constant 9 : index
    %c0_64 = arith.constant 0 : index
    %91 = vector.load %arg16[%c9, %c0_64] : memref<16x384xf32, #tpu.memory_space<vmem>>, vector<1x128xf32>
    %92 = vector.broadcast %91 : vector<1x128xf32> to vector<2x128xf32>
    %93 = arith.addf %90, %92 : vector<2x128xf32>
    %c0_65 = arith.constant 0 : index
    %c0_66 = arith.constant 0 : index
    %94 = vector.load %arg17[%c0_65, %c0_66] : memref<2x128xf32, #tpu.memory_space<vmem>>, vector<2x128xf32>
    tpu.vector_store %arg17[%c0_65, %c0_66], %93 {strides = array<i32>} : memref<2x128xf32, #tpu.memory_space<vmem>>, vector<2x128xf32>,
    return
  }
  func.func @transform_0(%arg0: i32) -> (i32, i32) {
    %c0_i32 = arith.constant 0 : i32
    %c0_i32_0 = arith.constant 0 : i32
    return %arg0, %c0_i32 : i32, i32
  }
  func.func @transform_1(%arg0: i32) -> (i32, i32) {
    %c0_i32 = arith.constant 0 : i32
    %c0_i32_0 = arith.constant 0 : i32
    return %arg0, %c0_i32 : i32, i32
  }
  func.func @transform_2(%arg0: i32) -> (i32, i32) {
    %c0_i32 = arith.constant 0 : i32
    %c0_i32_0 = arith.constant 0 : i32
    return %arg0, %c0_i32 : i32, i32
  }
  func.func @transform_3(%arg0: i32) -> (i32, i32) {
    %c0_i32 = arith.constant 0 : i32
    %c0_i32_0 = arith.constant 0 : i32
    %c0_i32_1 = arith.constant 0 : i32
    return %c0_i32, %c0_i32_0 : i32, i32
  }
  func.func @transform_4(%arg0: i32) -> (i32, i32) {
    %c0_i32 = arith.constant 0 : i32
    %c0_i32_0 = arith.constant 0 : i32
    %c0_i32_1 = arith.constant 0 : i32
    return %c0_i32, %c0_i32_0 : i32, i32
  }
  func.func @transform_5(%arg0: i32) -> (i32, i32) {
    %c0_i32 = arith.constant 0 : i32
    %c0_i32_0 = arith.constant 0 : i32
    %c0_i32_1 = arith.constant 0 : i32
    return %c0_i32, %c0_i32_0 : i32, i32
  }
  func.func @transform_6(%arg0: i32) -> (i32, i32) {
    %c0_i32 = arith.constant 0 : i32
    %c0_i32_0 = arith.constant 0 : i32
    %c0_i32_1 = arith.constant 0 : i32
    return %c0_i32, %c0_i32_0 : i32, i32
  }
  func.func @transform_7(%arg0: i32) -> (i32, i32) {
    %c0_i32 = arith.constant 0 : i32
    %c0_i32_0 = arith.constant 0 : i32
    %c0_i32_1 = arith.constant 0 : i32
    return %c0_i32, %c0_i32_0 : i32, i32
  }
  func.func @transform_8(%arg0: i32) -> (i32, i32) {
    %c0_i32 = arith.constant 0 : i32
    %c0_i32_0 = arith.constant 0 : i32
    %c0_i32_1 = arith.constant 0 : i32
    return %c0_i32, %c0_i32_0 : i32, i32
  }
  func.func @transform_9(%arg0: i32) -> (i32, i32) {
    %c0_i32 = arith.constant 0 : i32
    %c0_i32_0 = arith.constant 0 : i32
    %c0_i32_1 = arith.constant 0 : i32
    return %c0_i32, %c0_i32_0 : i32, i32
  }
  func.func @transform_10(%arg0: i32) -> (i32, i32) {
    %c0_i32 = arith.constant 0 : i32
    %c0_i32_0 = arith.constant 0 : i32
    %c0_i32_1 = arith.constant 0 : i32
    return %c0_i32, %c0_i32_0 : i32, i32
  }
  func.func @transform_11(%arg0: i32) -> (i32, i32) {
    %c0_i32 = arith.constant 0 : i32
    %c0_i32_0 = arith.constant 0 : i32
    %c0_i32_1 = arith.constant 0 : i32
    return %c0_i32, %c0_i32_0 : i32, i32
  }
  func.func @transform_12(%arg0: i32) -> (i32, i32) {
    %c0_i32 = arith.constant 0 : i32
    %c0_i32_0 = arith.constant 0 : i32
    %c0_i32_1 = arith.constant 0 : i32
    return %c0_i32, %c0_i32_0 : i32, i32
  }
  func.func @transform_13(%arg0: i32) -> (i32, i32) {
    %c0_i32 = arith.constant 0 : i32
    %c0_i32_0 = arith.constant 0 : i32
    %c0_i32_1 = arith.constant 0 : i32
    return %c0_i32, %c0_i32_0 : i32, i32
  }
  func.func @transform_14(%arg0: i32) -> (i32, i32) {
    %c0_i32 = arith.constant 0 : i32
    %c0_i32_0 = arith.constant 0 : i32
    %c0_i32_1 = arith.constant 0 : i32
    return %c0_i32, %c0_i32_0 : i32, i32
  }
  func.func @transform_15(%arg0: i32) -> (i32, i32) {
    %c0_i32 = arith.constant 0 : i32
    %c0_i32_0 = arith.constant 0 : i32
    %c0_i32_1 = arith.constant 0 : i32
    return %c0_i32, %c0_i32_0 : i32, i32
  }
  func.func @transform_16(%arg0: i32) -> (i32, i32) {
    %c0_i32 = arith.constant 0 : i32
    %c0_i32_0 = arith.constant 0 : i32
    return %arg0, %c0_i32 : i32, i32
  }
}

</mosaic_0001>

<llo_original>
// kernel: tpu_custom_call.1
$region0: #{tpu_custom_call.1}
  #allocation0 [shape = 'u32[]', space=smem, size = 0x4, offset = 0x4, fixed_abs, tag = 'smem constant byte address 0x4 - core index']
  #allocation1 [shape = 'u32[144,128]{1,0:T(1,128)}', space=vmem, size = 0x12000, scoped, tag = 'internal scratch']
  %s0 = inlined_call_operand.vmem [shape: f32[2,133], index: 0, kind: input, shape index: {}]
  %s1 = inlined_call_operand.hbm [shape: f32[2,208], index: 1, kind: input, shape index: {}]
  %s2 = inlined_call_operand.vmem [shape: f32[2,50], index: 2, kind: input, shape index: {}]
  %s3 = inlined_call_operand.vmem [shape: f32[208,320], index: 3, kind: input, shape index: {}]
  %s4 = inlined_call_operand.vmem [shape: f32[320,240], index: 4, kind: input, shape index: {}]
  %s5 = inlined_call_operand.vmem [shape: f32[240,96], index: 5, kind: input, shape index: {}]
  %s6 = inlined_call_operand.hbm [shape: f32[50,64], index: 6, kind: input, shape index: {}]
  %s7 = inlined_call_operand.vmem [shape: f32[64,32], index: 7, kind: input, shape index: {}]
  %s8 = inlined_call_operand.vmem [shape: f32[32,24], index: 8, kind: input, shape index: {}]
  %s9 = inlined_call_operand.hbm [shape: f32[133,256], index: 9, kind: input, shape index: {}]
  %s10 = inlined_call_operand.hbm [shape: f32[96,256], index: 10, kind: input, shape index: {}]
  %s11 = inlined_call_operand.hbm [shape: f32[24,256], index: 11, kind: input, shape index: {}]
  %s12 = inlined_call_operand.vmem [shape: f32[256,160], index: 12, kind: input, shape index: {}]
  %s13 = inlined_call_operand.vmem [shape: f32[160,128], index: 13, kind: input, shape index: {}]
  %s14 = inlined_call_operand.hbm [shape: f32[128,128], index: 14, kind: input, shape index: {}]
  %s15 = inlined_call_operand.hbm [shape: f32[16,384], index: 15, kind: input, shape index: {}]
  %s16 = inlined_call_operand.hbm [shape: f32[2,128], index: 16, kind: output, shape index: {}]
  %s17 = sld [smem:[#allocation0]]
  $region102: #{tpu_custom_call.1} parent=0
    _
  %s19 = ssub.s32 1, %s17
  %s20 = scalar_select 0, %s19, %s17
  $region1: #{tpu_custom_call.1} parent=0
    #allocation2 [shape = 'u8[2048]{0}', space=vmem, size = 0x800, scoped, tag = 'input window, operand 1, single buffered']
    #allocation3 [shape = 's32[1]{0}', space=sflag, size = 0x4, scoped, tag = 'scoped memory for tpu_custom_call.1']
    #allocation4 [shape = 's32[1]{0}', space=sflag, size = 0x4, scoped, tag = 'scoped memory for tpu_custom_call.1']
    #allocation5 [shape = 'u8[28672]{0}', space=vmem, size = 0x7000, scoped, tag = 'input window, operand 6, single buffered']
    #allocation6 [shape = 's32[1]{0}', space=sflag, size = 0x4, scoped, tag = 'scoped memory for tpu_custom_call.1']
    #allocation7 [shape = 'u8[139264]{0}', space=vmem, size = 0x22000, scoped, tag = 'input window, operand 9, single buffered']
    #allocation8 [shape = 'u8[98304]{0}', space=vmem, size = 0x18000, scoped, tag = 'input window, operand 10, single buffered']
    #allocation9 [shape = 's32[1]{0}', space=sflag, size = 0x4, scoped, tag = 'scoped memory for tpu_custom_call.1']
    #allocation10 [shape = 'u8[24576]{0}', space=vmem, size = 0x6000, scoped, tag = 'input window, operand 11, single buffered']
    #allocation11 [shape = 'u8[65536]{0}', space=vmem, size = 0x10000, scoped, tag = 'input window, operand 14, single buffered']
    #allocation12 [shape = 's32[1]{0}', space=sflag, size = 0x4, scoped, tag = 'scoped memory for tpu_custom_call.1']
    #allocation13 [shape = 'u8[24576]{0}', space=vmem, size = 0x6000, scoped, tag = 'input window, operand 15, single buffered']
    #allocation14 [shape = 'u8[1024]{0}', space=vmem, size = 0x400, scoped, tag = 'output window, operand 0, single buffered']
    %21 = vsyncpa [#allocation3], 0
    %22 = vsyncpa [#allocation6], 0
    %23 = vsyncpa [#allocation9], 0
    %24 = vsyncpa [#allocation12], 0
    %25 = vsyncpa [#allocation4], 0
    // Predicated region
    $region2: #{tpu_custom_call.1} parent=1 // pred_check
      _
    $region3: #{tpu_custom_call.1} parent=1 // pred_check_branch
      %27 = sbr.rel (0) target = $region5
    $region4: #{tpu_custom_call.1} parent=1 // pred_region
      _
    $region5: #{tpu_custom_call.1} parent=1 // pred_fallthru
      _
    // Predicated region
    $region6: #{tpu_custom_call.1} parent=1 // pred_check
      _
    $region7: #{tpu_custom_call.1} parent=1 // pred_check_branch
      %29 = sbr.rel (0) target = $region9
    $region8: #{tpu_custom_call.1} parent=1 // pred_region
      %s31 = ssub.s32 64, 64
      %32 = vsyncadd [#allocation3], %s31
      %s34 = sshll.u32 [#allocation2], 4
      %s35 = int_to_ptr.vmem [resolvable:$true] %s34
      %37 = dma.hbm_to_vmem [thread:$0]  %s1, 64, %s35, [#allocation3]
    $region9: #{tpu_custom_call.1} parent=1 // pred_fallthru
      _
    // Predicated region
    $region10: #{tpu_custom_call.1} parent=1 // pred_check
      _
    $region11: #{tpu_custom_call.1} parent=1 // pred_check_branch
      %39 = sbr.rel (0) target = $region13
    $region12: #{tpu_custom_call.1} parent=1 // pred_region
      _
    $region13: #{tpu_custom_call.1} parent=1 // pred_fallthru
      _
    // Predicated region
    $region14: #{tpu_custom_call.1} parent=1 // pred_check
      _
    $region15: #{tpu_custom_call.1} parent=1 // pred_check_branch
      %41 = sbr.rel (0) target = $region17
    $region16: #{tpu_custom_call.1} parent=1 // pred_region
      _
    $region17: #{tpu_custom_call.1} parent=1 // pred_fallthru
      _
    // Predicated region
    $region18: #{tpu_custom_call.1} parent=1 // pred_check
      _
    $region19: #{tpu_custom_call.1} parent=1 // pred_check_branch
      %43 = sbr.rel (0) target = $region21
    $region20: #{tpu_custom_call.1} parent=1 // pred_region
      _
    $region21: #{tpu_custom_call.1} parent=1 // pred_fallthru
      _
    // Predicated region
    $region22: #{tpu_custom_call.1} parent=1 // pred_check
      _
    $region23: #{tpu_custom_call.1} parent=1 // pred_check_branch
      %45 = sbr.rel (0) target = $region25
    $region24: #{tpu_custom_call.1} parent=1 // pred_region
      _
    $region25: #{tpu_custom_call.1} parent=1 // pred_fallthru
      _
    // Predicated region
    $region26: #{tpu_custom_call.1} parent=1 // pred_check
      _
    $region27: #{tpu_custom_call.1} parent=1 // pred_check_branch
      %47 = sbr.rel (0) target = $region29
    $region28: #{tpu_custom_call.1} parent=1 // pred_region
      %s49 = ssub.s32 896, 896
      %50 = vsyncadd [#allocation6], %s49
      %s51 = sshll.u32 [#allocation5], 4
      %s52 = int_to_ptr.vmem [resolvable:$true] %s51
      %57 = dma.hbm_to_vmem [thread:$0]  %s6, 896, %s52, [#allocation6], 128, 128, 8
    $region29: #{tpu_custom_call.1} parent=1 // pred_fallthru
      _
    // Predicated region
    $region30: #{tpu_custom_call.1} parent=1 // pred_check
      _
    $region31: #{tpu_custom_call.1} parent=1 // pred_check_branch
      %59 = sbr.rel (0) target = $region33
    $region32: #{tpu_custom_call.1} parent=1 // pred_region
      _
    $region33: #{tpu_custom_call.1} parent=1 // pred_fallthru
      _
    // Predicated region
    $region34: #{tpu_custom_call.1} parent=1 // pred_check
      _
    $region35: #{tpu_custom_call.1} parent=1 // pred_check_branch
      %61 = sbr.rel (0) target = $region37
    $region36: #{tpu_custom_call.1} parent=1 // pred_region
      _
    $region37: #{tpu_custom_call.1} parent=1 // pred_fallthru
      _
    // Predicated region
    $region38: #{tpu_custom_call.1} parent=1 // pred_check
      _
    $region39: #{tpu_custom_call.1} parent=1 // pred_check_branch
      %63 = sbr.rel (0) target = $region41
    $region40: #{tpu_custom_call.1} parent=1 // pred_region
      %s65 = ssub.s32 4352, 4352
      %66 = vsyncadd [#allocation6], %s65
      %s67 = sshll.u32 [#allocation7], 4
      %s68 = int_to_ptr.vmem [resolvable:$true] %s67
      %73 = dma.hbm_to_vmem [thread:$0]  %s9, 4352, %s68, [#allocation6], 256, 256, 16
    $region41: #{tpu_custom_call.1} parent=1 // pred_fallthru
      _
    // Predicated region
    $region42: #{tpu_custom_call.1} parent=1 // pred_check
      _
    $region43: #{tpu_custom_call.1} parent=1 // pred_check_branch
      %75 = sbr.rel (0) target = $region45
    $region44: #{tpu_custom_call.1} parent=1 // pred_region
      %s77 = ssub.s32 3072, 3072
      %78 = vsyncadd [#allocation9], %s77
      %s79 = sshll.u32 [#allocation8], 4
      %s80 = int_to_ptr.vmem [resolvable:$true] %s79
      %85 = dma.hbm_to_vmem [thread:$0]  %s10, 3072, %s80, [#allocation9], 256, 256, 16
    $region45: #{tpu_custom_call.1} parent=1 // pred_fallthru
      _
    // Predicated region
    $region46: #{tpu_custom_call.1} parent=1 // pred_check
      _
    $region47: #{tpu_custom_call.1} parent=1 // pred_check_branch
      %87 = sbr.rel (0) target = $region49
    $region48: #{tpu_custom_call.1} parent=1 // pred_region
      %s89 = ssub.s32 768, 768
      %90 = vsyncadd [#allocation9], %s89
      %s91 = sshll.u32 [#allocation10], 4
      %s92 = int_to_ptr.vmem [resolvable:$true] %s91
      %97 = dma.hbm_to_vmem [thread:$0]  %s11, 768, %s92, [#allocation9], 256, 256, 16
    $region49: #{tpu_custom_call.1} parent=1 // pred_fallthru
      _
    // Predicated region
    $region50: #{tpu_custom_call.1} parent=1 // pred_check
      _
    $region51: #{tpu_custom_call.1} parent=1 // pred_check_branch
      %99 = sbr.rel (0) target = $region53
    $region52: #{tpu_custom_call.1} parent=1 // pred_region
      _
    $region53: #{tpu_custom_call.1} parent=1 // pred_fallthru
      _
    // Predicated region
    $region54: #{tpu_custom_call.1} parent=1 // pred_check
      _
    $region55: #{tpu_custom_call.1} parent=1 // pred_check_branch
      %101 = sbr.rel (0) target = $region57
    $region56: #{tpu_custom_call.1} parent=1 // pred_region
      _
    $region57: #{tpu_custom_call.1} parent=1 // pred_fallthru
      _
    // Predicated region
    $region58: #{tpu_custom_call.1} parent=1 // pred_check
      _
    $region59: #{tpu_custom_call.1} parent=1 // pred_check_branch
      %103 = sbr.rel (0) target = $region61
    $region60: #{tpu_custom_call.1} parent=1 // pred_region
      %s105 = ssub.s32 2048, 2048
      %106 = vsyncadd [#allocation12], %s105
      %s107 = sshll.u32 [#allocation11], 4
      %s108 = int_to_ptr.vmem [resolvable:$true] %s107
      %113 = dma.hbm_to_vmem [thread:$0]  %s14, 2048, %s108, [#allocation12], 128, 128, 8
    $region61: #{tpu_custom_call.1} parent=1 // pred_fallthru
      _
    // Predicated region
    $region62: #{tpu_custom_call.1} parent=1 // pred_check
      _
    $region63: #{tpu_custom_call.1} parent=1 // pred_check_branch
      %115 = sbr.rel (0) target = $region65
    $region64: #{tpu_custom_call.1} parent=1 // pred_region
      %s117 = ssub.s32 768, 768
      %118 = vsyncadd [#allocation12], %s117
      %s119 = sshll.u32 [#allocation13], 4
      %s120 = int_to_ptr.vmem [resolvable:$true] %s119
      %125 = dma.hbm_to_vmem [thread:$0]  %s15, 768, %s120, [#allocation12], 384, 384, 24
    $region65: #{tpu_custom_call.1} parent=1 // pred_fallthru
      _
    // Predicated region
    $region66: #{tpu_custom_call.1} parent=1 // pred_check
      _
    $region67: #{tpu_custom_call.1} parent=1 // pred_check_branch
      %127 = sbr.rel (0) target = $region69
    $region68: #{tpu_custom_call.1} parent=1 // pred_region
      %128 = dma.done [#allocation3], 64
    $region69: #{tpu_custom_call.1} parent=1 // pred_fallthru
      _
    // Predicated region
    $region70: #{tpu_custom_call.1} parent=1 // pred_check
      _
    $region71: #{tpu_custom_call.1} parent=1 // pred_check_branch
      %130 = sbr.rel (0) target = $region73
    $region72: #{tpu_custom_call.1} parent=1 // pred_region
      %131 = dma.done [#allocation6], 896
    $region73: #{tpu_custom_call.1} parent=1 // pred_fallthru
      _
    // Predicated region
    $region74: #{tpu_custom_call.1} parent=1 // pred_check
      _
    $region75: #{tpu_custom_call.1} parent=1 // pred_check_branch
      %133 = sbr.rel (0) target = $region77
    $region76: #{tpu_custom_call.1} parent=1 // pred_region
      %134 = dma.done [#allocation6], 4352
    $region77: #{tpu_custom_call.1} parent=1 // pred_fallthru
      _
    // Predicated region
    $region78: #{tpu_custom_call.1} parent=1 // pred_check
      _
    $region79: #{tpu_custom_call.1} parent=1 // pred_check_branch
      %136 = sbr.rel (0) target = $region81
    $region80: #{tpu_custom_call.1} parent=1 // pred_region
      %137 = dma.done [#allocation9], 3072
    $region81: #{tpu_custom_call.1} parent=1 // pred_fallthru
      _
    // Predicated region
    $region82: #{tpu_custom_call.1} parent=1 // pred_check
      _
    $region83: #{tpu_custom_call.1} parent=1 // pred_check_branch
      %139 = sbr.rel (0) target = $region85
    $region84: #{tpu_custom_call.1} parent=1 // pred_region
      %140 = dma.done [#allocation9], 768
    $region85: #{tpu_custom_call.1} parent=1 // pred_fallthru
      _
    // Predicated region
    $region86: #{tpu_custom_call.1} parent=1 // pred_check
      _
    $region87: #{tpu_custom_call.1} parent=1 // pred_check_branch
      %142 = sbr.rel (0) target = $region89
    $region88: #{tpu_custom_call.1} parent=1 // pred_region
      %143 = dma.done [#allocation12], 2048
    $region89: #{tpu_custom_call.1} parent=1 // pred_fallthru
      _
    // Predicated region
    $region90: #{tpu_custom_call.1} parent=1 // pred_check
      _
    $region91: #{tpu_custom_call.1} parent=1 // pred_check_branch
      %145 = sbr.rel (0) target = $region93
    $region92: #{tpu_custom_call.1} parent=1 // pred_region
      %146 = dma.done [#allocation12], 768
    $region93: #{tpu_custom_call.1} parent=1 // pred_fallthru
      _
    %v147 = vld [vmem:[#allocation2] sm:$0xf]
    %v148 = vld [vmem:[%s3] sm:$0xff]
    %v149 = vld [vmem:[%s3 + $0x8] sm:$0xff]
    %v150 = vld [vmem:[%s3 + $0x10] sm:$0xff]
    %v151 = vld [vmem:[%s3 + $0x18] sm:$0xff]
    %v152 = vld [vmem:[%s3 + $0x20] sm:$0xff]
    %v153 = vld [vmem:[%s3 + $0x28] sm:$0xff]
    %v154 = vld [vmem:[%s3 + $0x30] sm:$0xff]
    %v155 = vld [vmem:[%s3 + $0x38] sm:$0xff]
    %v156 = vld [vmem:[%s3 + $0x40] sm:$0xff]
    %v157 = vld [vmem:[%s3 + $0x48] sm:$0xff]
    %v158 = vld [vmem:[%s3 + $0x50] sm:$0xff]
    %v159 = vld [vmem:[%s3 + $0x58] sm:$0xff]
    %v160 = vld [vmem:[%s3 + $0x60] sm:$0xff]
    %v161 = vld [vmem:[%s3 + $0x68] sm:$0xff]
    %v162 = vld [vmem:[%s3 + $0x70] sm:$0xff]
    %v163 = vld [vmem:[%s3 + $0x78] sm:$0xff]
    %v164 = vld [vmem:[%s3 + $0x80] sm:$0xff]
    %v165 = vld [vmem:[%s3 + $0x88] sm:$0xff]
    %v166 = vld [vmem:[%s3 + $0x90] sm:$0xff]
    %v167 = vld [vmem:[%s3 + $0x98] sm:$0xff]
    %v168 = vld [vmem:[%s3 + $0xa0] sm:$0xff]
    %v169 = vld [vmem:[%s3 + $0xa8] sm:$0xff]
    %v170 = vld [vmem:[%s3 + $0xb0] sm:$0xff]
    %v171 = vld [vmem:[%s3 + $0xb8] sm:$0xff]
    %v172 = vld [vmem:[%s3 + $0xc0] sm:$0xff]
    %v173 = vld [vmem:[%s3 + $0xc8] sm:$0xff]
    %v174 = vld [vmem:[%s3 + $0xd0] sm:$0xff]
    %v175 = vld [vmem:[%s3 + $0xd8] sm:$0xff]
    %v176 = vld [vmem:[%s3 + $0xe0] sm:$0xff]
    %v177 = vld [vmem:[%s3 + $0xe8] sm:$0xff]
    %v178 = vld [vmem:[%s3 + $0xf0] sm:$0xff]
    %v179 = vld [vmem:[%s3 + $0xf8] sm:$0xff]
    %v180 = vld [vmem:[%s3 + $0x100] sm:$0xff]
    %v181 = vld [vmem:[%s3 + $0x108] sm:$0xff]
    %v182 = vld [vmem:[%s3 + $0x110] sm:$0xff]
    %v183 = vld [vmem:[%s3 + $0x118] sm:$0xff]
    %v184 = vld [vmem:[%s3 + $0x120] sm:$0xff]
    %v185 = vld [vmem:[%s3 + $0x128] sm:$0xff]
    %v186 = vld [vmem:[%s3 + $0x130] sm:$0xff]
    %v187 = vld [vmem:[%s3 + $0x138] sm:$0xff]
    %v188 = vld [vmem:[%s3 + $0x140] sm:$0xff]
    %v189 = vld [vmem:[%s3 + $0x148] sm:$0xff]
    %v190 = vld [vmem:[%s3 + $0x150] sm:$0xff]
    %v191 = vld [vmem:[%s3 + $0x158] sm:$0xff]
    %v192 = vld [vmem:[%s3 + $0x160] sm:$0xff]
    %v193 = vld [vmem:[%s3 + $0x168] sm:$0xff]
    %v194 = vld [vmem:[%s3 + $0x170] sm:$0xff]
    %v195 = vld [vmem:[%s3 + $0x178] sm:$0xff]
    %v196 = vld [vmem:[%s3 + $0x180] sm:$0xff]
    %v197 = vld [vmem:[%s3 + $0x188] sm:$0xff]
    %v198 = vld [vmem:[%s3 + $0x190] sm:$0xff]
    %v199 = vld [vmem:[%s3 + $0x198] sm:$0xff]
    %v200 = vld [vmem:[%s3 + $0x1a0] sm:$0xff]
    %v201 = vld [vmem:[%s3 + $0x1a8] sm:$0xff]
    %v202 = vld [vmem:[%s3 + $0x1b0] sm:$0xff]
    %v203 = vld [vmem:[%s3 + $0x1b8] sm:$0xff]
    %v204 = vld [vmem:[%s3 + $0x1c0] sm:$0xff]
    %v205 = vld [vmem:[%s3 + $0x1c8] sm:$0xff]
    %v206 = vld [vmem:[%s3 + $0x1d0] sm:$0xff]
    %v207 = vld [vmem:[%s3 + $0x1d8] sm:$0xff]
    %v208 = vld [vmem:[%s3 + $0x1e0] sm:$0xff]
    %v209 = vld [vmem:[%s3 + $0x1e8] sm:$0xff]
    %v210 = vld [vmem:[%s3 + $0x1f0] sm:$0xff]
    %v211 = vld [vmem:[%s3 + $0x1f8] sm:$0xff]
    %v212 = vld [vmem:[%s3 + $0x200] sm:$0xff]
    %v213 = vld [vmem:[%s3 + $0x208] sm:$0xff]
    %v214 = vld [vmem:[%s3 + $0x210] sm:$0xff]
    %v215 = vld [vmem:[%s3 + $0x218] sm:$0xff]
    %v216 = vld [vmem:[%s3 + $0x220] sm:$0xff]
    %v217 = vld [vmem:[%s3 + $0x228] sm:$0xff]
    %v218 = vld [vmem:[%s3 + $0x230] sm:$0xff]
    %v219 = vld [vmem:[%s3 + $0x238] sm:$0xff]
    %v220 = vld [vmem:[%s3 + $0x240] sm:$0xff]
    %v221 = vld [vmem:[%s3 + $0x248] sm:$0xff]
    %v222 = vld [vmem:[%s3 + $0x250] sm:$0xff]
    %v223 = vld [vmem:[%s3 + $0x258] sm:$0xff]
    %v224 = vld [vmem:[%s3 + $0x260] sm:$0xff]
    %v225 = vld [vmem:[%s3 + $0x268] sm:$0xff]
    %v226 = vld [vmem:[#allocation13] ss:$8 sm:$0x7]
    %v228 = vlaneseq
    %v229 = vshrl.u32 %v228, 7
    %v230 = vsub.s32 0, %v229
    %v231 = vrot.slane %v226, %v230
    %v232 = vlaneseq
    %v233 = vshrl.u32 %v232, 7
    %v234 = vsub.s32 1, %v233
    %v235 = vrot.slane %v226, %v234
    %v236 = vlaneseq
    %v237 = vshrl.u32 %v236, 7
    %v238 = vsub.s32 2, %v237
    %v239 = vrot.slane %v226, %v238
    %v245 = vunpack.c.l.s4 1983009808
    %v246 = vunpack.c.0.s8 %v245
    %v247 = vlaneseq
    %v248 = vshrl.u32 %v247, 7
    %v249 = vsub.s32 %v246, %v248
    %v250 = vrot.slane %v147, %v249
    %v251 = vcombine.high %v250, %v250
    %vm253 = vcmask 654336
    %v254 = vsel %vm253, %v251, 0
    %256 = vmatprep.subr.mxu0 %v149
    %257 = vmatpush1.msra.mxu0 %v148
    %258 = vmatprep.subr.mxu0 %v152
    %259 = vmatpush1.msra.mxu0 %v151
    %260 = vmatprep.subr.mxu0 %v155
    %261 = vmatpush1.msra.mxu0 %v154
    %262 = vmatprep.subr.mxu0 %v158
    %263 = vmatpush1.msra.mxu0 %v157
    %264 = vmatprep.subr.mxu0 %v161
    %265 = vmatpush1.msra.mxu0 %v160
    %266 = vmatprep.subr.mxu0 %v164
    %267 = vmatpush1.msra.mxu0 %v163
    %268 = vmatprep.subr.mxu0 %v167
    %269 = vmatpush1.msra.mxu0 %v166
    %270 = vmatprep.subr.mxu0 %v170
    %271 = vmatpush1.msra.mxu0 %v169
    %272 = vmatprep.subr.mxu0 %v173
    %273 = vmatpush1.msra.mxu0 %v172
    %274 = vmatprep.subr.mxu0 %v176
    %275 = vmatpush1.msra.mxu0 %v175
    %276 = vmatprep.subr.mxu0 %v179
    %277 = vmatpush1.msra.mxu0 %v178
    %278 = vmatprep.subr.mxu0 %v182
    %279 = vmatpush1.msra.mxu0 %v181
    %280 = vmatprep.subr.mxu0 %v185
    %281 = vmatpush1.msra.mxu0 %v184
    %282 = vmatprep.subr.mxu0 %v188
    %283 = vmatpush1.msra.mxu0 %v187
    %284 = vmatprep.subr.mxu0 %v191
    %285 = vmatpush1.msra.mxu0 %v190
    %286 = vmatprep.subr.mxu0 %v194
    %287 = vmatpush1.msra.mxu0 %v193
    %288 = vmatprep.subr.mxu0 %v197
    %289 = vmatpush1.msra.mxu0 %v196
    %290 = vmatprep.subr.mxu0 %v200
    %291 = vmatpush1.msra.mxu0 %v199
    %292 = vmatprep.subr.mxu0 %v203
    %293 = vmatpush1.msra.mxu0 %v202
    %294 = vmatprep.subr.mxu0 %v206
    %295 = vmatpush1.msra.mxu0 %v205
    %296 = vmatprep.subr.mxu0 %v209
    %297 = vmatpush1.msra.mxu0 %v208
    %298 = vmatprep.subr.mxu0 %v212
    %299 = vmatpush1.msra.mxu0 %v211
    %300 = vmatprep.subr.mxu0 %v215
    %301 = vmatpush1.msra.mxu0 %v214
    %302 = vmatprep.subr.mxu0 %v218
    %303 = vmatpush1.msra.mxu0 %v217
    %304 = vmatprep.subr.mxu0 %v221
    %305 = vmatpush1.msra.mxu0 %v220
    %306 = vmatprep.subr.mxu0 %v224
    %307 = vmatpush1.msra.mxu0 %v223
    %308 = vmatprep.subr.mxu0 0.0
    %309 = vmatpush1.msra.mxu0 0.0
    %310 = vmatprep.subr.mxu0 0.0
    %311 = vmatpush1.msra.mxu0 0.0
    %312 = vmatprep.subr.mxu0 0.0
    %313 = vmatpush1.msra.mxu0 0.0
    %314 = vmatprep.subr.mxu0 0.0
    %315 = vmatpush1.msra.mxu0 0.0
    %316 = vmatprep.subr.mxu0 0.0
    %317 = vmatpush1.msra.mxu0 0.0
    %318 = vmatprep.subr.mxu0 0.0
    %319 = vmatpush1.msra.mxu0 0.0
    %320 = vmatprep.mubr.f32.mxu0 %v254
    %321 = vmatmul.mubr.f32.gmra.mrb[0].mxu0 %v250
    %v322 = vpop.f32.mrb[0].mxu0
    %v323 = vadd.f32 %v231, %v322
    %v324 = vpop.f32.mrb[0].mxu0
    %v325 = vadd.f32 %v235, %v324
    %326 = vdwg.mxu0
    %327 = vmatprep.subr.mxu0 0.0
    %328 = vmatpush1.msra.mxu0 %v150
    %329 = vmatprep.subr.mxu0 0.0
    %330 = vmatpush1.msra.mxu0 %v153
    %331 = vmatprep.subr.mxu0 0.0
    %332 = vmatpush1.msra.mxu0 %v156
    %333 = vmatprep.subr.mxu0 0.0
    %334 = vmatpush1.msra.mxu0 %v159
    %335 = vmatprep.subr.mxu0 0.0
    %336 = vmatpush1.msra.mxu0 %v162
    %337 = vmatprep.subr.mxu0 0.0
    %338 = vmatpush1.msra.mxu0 %v165
    %339 = vmatprep.subr.mxu0 0.0
    %340 = vmatpush1.msra.mxu0 %v168
    %341 = vmatprep.subr.mxu0 0.0
    %342 = vmatpush1.msra.mxu0 %v171
    %343 = vmatprep.subr.mxu0 0.0
    %344 = vmatpush1.msra.mxu0 %v174
    %345 = vmatprep.subr.mxu0 0.0
    %346 = vmatpush1.msra.mxu0 %v177
    %347 = vmatprep.subr.mxu0 0.0
    %348 = vmatpush1.msra.mxu0 %v180
    %349 = vmatprep.subr.mxu0 0.0
    %350 = vmatpush1.msra.mxu0 %v183
    %351 = vmatprep.subr.mxu0 0.0
    %352 = vmatpush1.msra.mxu0 %v186
    %353 = vmatprep.subr.mxu0 0.0
    %354 = vmatpush1.msra.mxu0 %v189
    %355 = vmatprep.subr.mxu0 0.0
    %356 = vmatpush1.msra.mxu0 %v192
    %357 = vmatprep.subr.mxu0 0.0
    %358 = vmatpush1.msra.mxu0 %v195
    %359 = vmatprep.subr.mxu0 0.0
    %360 = vmatpush1.msra.mxu0 %v198
    %361 = vmatprep.subr.mxu0 0.0
    %362 = vmatpush1.msra.mxu0 %v201
    %363 = vmatprep.subr.mxu0 0.0
    %364 = vmatpush1.msra.mxu0 %v204
    %365 = vmatprep.subr.mxu0 0.0
    %366 = vmatpush1.msra.mxu0 %v207
    %367 = vmatprep.subr.mxu0 0.0
    %368 = vmatpush1.msra.mxu0 %v210
    %369 = vmatprep.subr.mxu0 0.0
    %370 = vmatpush1.msra.mxu0 %v213
    %371 = vmatprep.subr.mxu0 0.0
    %372 = vmatpush1.msra.mxu0 %v216
    %373 = vmatprep.subr.mxu0 0.0
    %374 = vmatpush1.msra.mxu0 %v219
    %375 = vmatprep.subr.mxu0 0.0
    %376 = vmatpush1.msra.mxu0 %v222
    %377 = vmatprep.subr.mxu0 0.0
    %378 = vmatpush1.msra.mxu0 %v225
    %379 = vmatprep.subr.mxu0 0.0
    %380 = vmatpush1.msra.mxu0 0.0
    %381 = vmatprep.subr.mxu0 0.0
    %382 = vmatpush1.msra.mxu0 0.0
    %383 = vmatprep.subr.mxu0 0.0
    %384 = vmatpush1.msra.mxu0 0.0
    %385 = vmatprep.subr.mxu0 0.0
    %386 = vmatpush1.msra.mxu0 0.0
    %387 = vmatprep.subr.mxu0 0.0
    %388 = vmatpush1.msra.mxu0 0.0
    %389 = vmatprep.subr.mxu0 0.0
    %390 = vmatpush1.msra.mxu0 0.0
    %391 = vmatprep.mubr.f32.mxu0 %v254
    %392 = vmatmul.mubr.f32.gmra.mrb[0].mxu0 %v250
    %v393 = vpop.f32.mrb[0].mxu0
    %v394 = vadd.f32 %v239, %v393
    %v395 = vpop.f32.mrb[0].mxu0
    %396 = vdwg.mxu0
    %vm397 = vcmp.gt.f32.partialorder %v323, 0.0
    %vm398 = vcmp.gt.f32.partialorder %v325, 0.0
    %vm399 = vcmp.gt.f32.partialorder %v394, 0.0
    %v400 = vmul.f32 %v323, 0.01
    %v401 = vmul.f32 %v325, 0.01
    %v402 = vmul.f32 %v394, 0.01
    %v403 = vsel %vm397, %v323, %v400
    %v404 = vsel %vm398, %v325, %v401
    %v405 = vsel %vm399, %v394, %v402
    %v406 = vld [vmem:[%s4] sm:$0xff]
    %v407 = vld [vmem:[%s4 + $0x8] sm:$0xff]
    %v408 = vld [vmem:[%s4 + $0x10] sm:$0xff]
    %v409 = vld [vmem:[%s4 + $0x18] sm:$0xff]
    %v410 = vld [vmem:[%s4 + $0x20] sm:$0xff]
    %v411 = vld [vmem:[%s4 + $0x28] sm:$0xff]
    %v412 = vld [vmem:[%s4 + $0x30] sm:$0xff]
    %v413 = vld [vmem:[%s4 + $0x38] sm:$0xff]
    %v414 = vld [vmem:[%s4 + $0x40] sm:$0xff]
    %v415 = vld [vmem:[%s4 + $0x48] sm:$0xff]
    %v416 = vld [vmem:[%s4 + $0x50] sm:$0xff]
    %v417 = vld [vmem:[%s4 + $0x58] sm:$0xff]
    %v418 = vld [vmem:[%s4 + $0x60] sm:$0xff]
    %v419 = vld [vmem:[%s4 + $0x68] sm:$0xff]
    %v420 = vld [vmem:[%s4 + $0x70] sm:$0xff]
    %v421 = vld [vmem:[%s4 + $0x78] sm:$0xff]
    %v422 = vld [vmem:[%s4 + $0x80] sm:$0xff]
    %v423 = vld [vmem:[%s4 + $0x88] sm:$0xff]
    %v424 = vld [vmem:[%s4 + $0x90] sm:$0xff]
    %v425 = vld [vmem:[%s4 + $0x98] sm:$0xff]
    %v426 = vld [vmem:[%s4 + $0xa0] sm:$0xff]
    %v427 = vld [vmem:[%s4 + $0xa8] sm:$0xff]
    %v428 = vld [vmem:[%s4 + $0xb0] sm:$0xff]
    %v429 = vld [vmem:[%s4 + $0xb8] sm:$0xff]
    %v430 = vld [vmem:[%s4 + $0xc0] sm:$0xff]
    %v431 = vld [vmem:[%s4 + $0xc8] sm:$0xff]
    %v432 = vld [vmem:[%s4 + $0xd0] sm:$0xff]
    %v433 = vld [vmem:[%s4 + $0xd8] sm:$0xff]
    %v434 = vld [vmem:[%s4 + $0xe0] sm:$0xff]
    %v435 = vld [vmem:[%s4 + $0xe8] sm:$0xff]
    %v436 = vld [vmem:[%s4 + $0xf0] sm:$0xff]
    %v437 = vld [vmem:[%s4 + $0xf8] sm:$0xff]
    %v438 = vld [vmem:[%s4 + $0x100] sm:$0xff]
    %v439 = vld [vmem:[%s4 + $0x108] sm:$0xff]
    %v440 = vld [vmem:[%s4 + $0x110] sm:$0xff]
    %v441 = vld [vmem:[%s4 + $0x118] sm:$0xff]
    %v442 = vld [vmem:[%s4 + $0x120] sm:$0xff]
    %v443 = vld [vmem:[%s4 + $0x128] sm:$0xff]
    %v444 = vld [vmem:[%s4 + $0x130] sm:$0xff]
    %v445 = vld [vmem:[%s4 + $0x138] sm:$0xff]
    %v446 = vld [vmem:[%s4 + $0x140] sm:$0xff]
    %v447 = vld [vmem:[%s4 + $0x148] sm:$0xff]
    %v448 = vld [vmem:[%s4 + $0x150] sm:$0xff]
    %v449 = vld [vmem:[%s4 + $0x158] sm:$0xff]
    %v450 = vld [vmem:[%s4 + $0x160] sm:$0xff]
    %v451 = vld [vmem:[%s4 + $0x168] sm:$0xff]
    %v452 = vld [vmem:[%s4 + $0x170] sm:$0xff]
    %v453 = vld [vmem:[%s4 + $0x178] sm:$0xff]
    %v454 = vld [vmem:[%s4 + $0x180] sm:$0xff]
    %v455 = vld [vmem:[%s4 + $0x188] sm:$0xff]
    %v456 = vld [vmem:[%s4 + $0x190] sm:$0xff]
    %v457 = vld [vmem:[%s4 + $0x198] sm:$0xff]
    %v458 = vld [vmem:[%s4 + $0x1a0] sm:$0xff]
    %v459 = vld [vmem:[%s4 + $0x1a8] sm:$0xff]
    %v460 = vld [vmem:[%s4 + $0x1b0] sm:$0xff]
    %v461 = vld [vmem:[%s4 + $0x1b8] sm:$0xff]
    %v462 = vld [vmem:[%s4 + $0x1c0] sm:$0xff]
    %v463 = vld [vmem:[%s4 + $0x1c8] sm:$0xff]
    %v464 = vld [vmem:[%s4 + $0x1d0] sm:$0xff]
    %v465 = vld [vmem:[%s4 + $0x1d8] sm:$0xff]
    %v466 = vld [vmem:[%s4 + $0x1e0] sm:$0xff]
    %v467 = vld [vmem:[%s4 + $0x1e8] sm:$0xff]
    %v468 = vld [vmem:[%s4 + $0x1f0] sm:$0xff]
    %v469 = vld [vmem:[%s4 + $0x1f8] sm:$0xff]
    %v470 = vld [vmem:[%s4 + $0x200] sm:$0xff]
    %v471 = vld [vmem:[%s4 + $0x208] sm:$0xff]
    %v472 = vld [vmem:[%s4 + $0x210] sm:$0xff]
    %v473 = vld [vmem:[%s4 + $0x218] sm:$0xff]
    %v474 = vld [vmem:[%s4 + $0x220] sm:$0xff]
    %v475 = vld [vmem:[%s4 + $0x228] sm:$0xff]
    %v476 = vld [vmem:[%s4 + $0x230] sm:$0xff]
    %v477 = vld [vmem:[%s4 + $0x238] sm:$0xff]
    %v478 = vld [vmem:[%s4 + $0x240] sm:$0xff]
    %v479 = vld [vmem:[%s4 + $0x248] sm:$0xff]
    %v480 = vld [vmem:[%s4 + $0x250] sm:$0xff]
    %v481 = vld [vmem:[%s4 + $0x258] sm:$0xff]
    %v482 = vld [vmem:[%s4 + $0x260] sm:$0xff]
    %v483 = vld [vmem:[%s4 + $0x268] sm:$0xff]
    %v484 = vld [vmem:[%s4 + $0x270] sm:$0xff]
    %v485 = vld [vmem:[%s4 + $0x278] sm:$0xff]
    %s486 = scalar_lea.vmem [#allocation13], 1
    %v487 = vld [vmem:[%s486] ss:$8 sm:$0x3]
    %v489 = vlaneseq
    %v490 = vshrl.u32 %v489, 7
    %v491 = vsub.s32 0, %v490
    %v492 = vrot.slane %v487, %v491
    %v493 = vlaneseq
    %v494 = vshrl.u32 %v493, 7
    %v495 = vsub.s32 1, %v494
    %v496 = vrot.slane %v487, %v495
    %vm499 = vcmask 523264
    %v501 = vsel %vm499, %v405, 0
    %503 = vmatprep.subr.mxu0 %v407
    %504 = vmatpush1.msra.mxu0 %v406
    %505 = vmatprep.subr.mxu0 %v409
    %506 = vmatpush1.msra.mxu0 %v408
    %507 = vmatprep.subr.mxu0 %v411
    %508 = vmatpush1.msra.mxu0 %v410
    %509 = vmatprep.subr.mxu0 %v413
    %510 = vmatpush1.msra.mxu0 %v412
    %511 = vmatprep.subr.mxu0 %v415
    %512 = vmatpush1.msra.mxu0 %v414
    %513 = vmatprep.subr.mxu0 %v417
    %514 = vmatpush1.msra.mxu0 %v416
    %515 = vmatprep.subr.mxu0 %v419
    %516 = vmatpush1.msra.mxu0 %v418
    %517 = vmatprep.subr.mxu0 %v421
    %518 = vmatpush1.msra.mxu0 %v420
    %519 = vmatprep.subr.mxu0 %v423
    %520 = vmatpush1.msra.mxu0 %v422
    %521 = vmatprep.subr.mxu0 %v425
    %522 = vmatpush1.msra.mxu0 %v424
    %523 = vmatprep.subr.mxu0 %v427
    %524 = vmatpush1.msra.mxu0 %v426
    %525 = vmatprep.subr.mxu0 %v429
    %526 = vmatpush1.msra.mxu0 %v428
    %527 = vmatprep.subr.mxu0 %v431
    %528 = vmatpush1.msra.mxu0 %v430
    %529 = vmatprep.subr.mxu0 %v433
    %530 = vmatpush1.msra.mxu0 %v432
    %531 = vmatprep.subr.mxu0 %v435
    %532 = vmatpush1.msra.mxu0 %v434
    %533 = vmatprep.subr.mxu0 %v437
    %534 = vmatpush1.msra.mxu0 %v436
    %535 = vmatprep.subr.mxu0 %v439
    %536 = vmatpush1.msra.mxu0 %v438
    %537 = vmatprep.subr.mxu0 %v441
    %538 = vmatpush1.msra.mxu0 %v440
    %539 = vmatprep.subr.mxu0 %v443
    %540 = vmatpush1.msra.mxu0 %v442
    %541 = vmatprep.subr.mxu0 %v445
    %542 = vmatpush1.msra.mxu0 %v444
    %543 = vmatprep.subr.mxu0 %v447
    %544 = vmatpush1.msra.mxu0 %v446
    %545 = vmatprep.subr.mxu0 %v449
    %546 = vmatpush1.msra.mxu0 %v448
    %547 = vmatprep.subr.mxu0 %v451
    %548 = vmatpush1.msra.mxu0 %v450
    %549 = vmatprep.subr.mxu0 %v453
    %550 = vmatpush1.msra.mxu0 %v452
    %551 = vmatprep.subr.mxu0 %v455
    %552 = vmatpush1.msra.mxu0 %v454
    %553 = vmatprep.subr.mxu0 %v457
    %554 = vmatpush1.msra.mxu0 %v456
    %555 = vmatprep.subr.mxu0 %v459
    %556 = vmatpush1.msra.mxu0 %v458
    %557 = vmatprep.subr.mxu0 %v461
    %558 = vmatpush1.msra.mxu0 %v460
    %559 = vmatprep.subr.mxu0 %v463
    %560 = vmatpush1.msra.mxu0 %v462
    %561 = vmatprep.subr.mxu0 %v465
    %562 = vmatpush1.msra.mxu0 %v464
    %563 = vmatprep.subr.mxu0 %v467
    %564 = vmatpush1.msra.mxu0 %v466
    %565 = vmatprep.subr.mxu0 %v469
    %566 = vmatpush1.msra.mxu0 %v468
    %567 = vmatprep.mubr.f32.mxu0 %v404
    %568 = vmatmul.mubr.f32.gmra.mrb[0].mxu0 %v403
    %v569 = vpop.f32.mrb[0].mxu0
    %v570 = vadd.f32 %v492, %v569
    %v571 = vpop.f32.mrb[0].mxu0
    %v572 = vadd.f32 %v496, %v571
    %573 = vdwg.mxu0
    %574 = vmatprep.subr.mxu0 %v471
    %575 = vmatpush1.msra.mxu0 %v470
    %576 = vmatprep.subr.mxu0 %v473
    %577 = vmatpush1.msra.mxu0 %v472
    %578 = vmatprep.subr.mxu0 %v475
    %579 = vmatpush1.msra.mxu0 %v474
    %580 = vmatprep.subr.mxu0 %v477
    %581 = vmatpush1.msra.mxu0 %v476
    %582 = vmatprep.subr.mxu0 %v479
    %583 = vmatpush1.msra.mxu0 %v478
    %584 = vmatprep.subr.mxu0 %v481
    %585 = vmatpush1.msra.mxu0 %v480
    %586 = vmatprep.subr.mxu0 %v483
    %587 = vmatpush1.msra.mxu0 %v482
    %588 = vmatprep.subr.mxu0 %v485
    %589 = vmatpush1.msra.mxu0 %v484
    %590 = vmatprep.subr.mxu0 0.0
    %591 = vmatpush1.msra.mxu0 0.0
    %592 = vmatprep.subr.mxu0 0.0
    %593 = vmatpush1.msra.mxu0 0.0
    %594 = vmatprep.subr.mxu0 0.0
    %595 = vmatpush1.msra.mxu0 0.0
    %596 = vmatprep.subr.mxu0 0.0
    %597 = vmatpush1.msra.mxu0 0.0
    %598 = vmatprep.subr.mxu0 0.0
    %599 = vmatpush1.msra.mxu0 0.0
    %600 = vmatprep.subr.mxu0 0.0
    %601 = vmatpush1.msra.mxu0 0.0
    %602 = vmatprep.subr.mxu0 0.0
    %603 = vmatpush1.msra.mxu0 0.0
    %604 = vmatprep.subr.mxu0 0.0
    %605 = vmatpush1.msra.mxu0 0.0
    %606 = vmatprep.subr.mxu0 0.0
    %607 = vmatpush1.msra.mxu0 0.0
    %608 = vmatprep.subr.mxu0 0.0
    %609 = vmatpush1.msra.mxu0 0.0
    %610 = vmatprep.subr.mxu0 0.0
    %611 = vmatpush1.msra.mxu0 0.0
    %612 = vmatprep.subr.mxu0 0.0
    %613 = vmatpush1.msra.mxu0 0.0
    %614 = vmatprep.subr.mxu0 0.0
    %615 = vmatpush1.msra.mxu0 0.0
    %616 = vmatprep.subr.mxu0 0.0
    %617 = vmatpush1.msra.mxu0 0.0
    %618 = vmatprep.subr.mxu0 0.0
    %619 = vmatpush1.msra.mxu0 0.0
    %620 = vmatprep.subr.mxu0 0.0
    %621 = vmatpush1.msra.mxu0 0.0
    %622 = vmatprep.subr.mxu0 0.0
    %623 = vmatpush1.msra.mxu0 0.0
    %624 = vmatprep.subr.mxu0 0.0
    %625 = vmatpush1.msra.mxu0 0.0
    %626 = vmatprep.subr.mxu0 0.0
    %627 = vmatpush1.msra.mxu0 0.0
    %628 = vmatprep.subr.mxu0 0.0
    %629 = vmatpush1.msra.mxu0 0.0
    %630 = vmatprep.subr.mxu0 0.0
    %631 = vmatpush1.msra.mxu0 0.0
    %632 = vmatprep.subr.mxu0 0.0
    %633 = vmatpush1.msra.mxu0 0.0
    %634 = vmatprep.subr.mxu0 0.0
    %635 = vmatpush1.msra.mxu0 0.0
    %636 = vmatprep.subr.mxu0 0.0
    %637 = vmatpush1.msra.mxu0 0.0
    %638 = vmatprep.mubr.f32.mxu0 0.0
    %639 = vmatmul.mubr.f32.gmra.mrb[0].mxu0 %v501
    %v640 = vpop.f32.mrb[0].mxu0
    %v641 = vadd.f32 %v570, %v640
    %v642 = vpop.f32.mrb[0].mxu0
    %v643 = vadd.f32 %v572, %v642
    %644 = vdwg.mxu0
    %vm645 = vcmp.gt.f32.partialorder %v641, 0.0
    %vm646 = vcmp.gt.f32.partialorder %v643, 0.0
    %v647 = vmul.f32 %v641, 0.01
    %v648 = vmul.f32 %v643, 0.01
    %v649 = vsel %vm645, %v641, %v647
    %v650 = vsel %vm646, %v643, %v648
    %v651 = vld [vmem:[%s5] sm:$0xff]
    %v652 = vld [vmem:[%s5 + $0x8] sm:$0xff]
    %v653 = vld [vmem:[%s5 + $0x10] sm:$0xff]
    %v654 = vld [vmem:[%s5 + $0x18] sm:$0xff]
    %v655 = vld [vmem:[%s5 + $0x20] sm:$0xff]
    %v656 = vld [vmem:[%s5 + $0x28] sm:$0xff]
    %v657 = vld [vmem:[%s5 + $0x30] sm:$0xff]
    %v658 = vld [vmem:[%s5 + $0x38] sm:$0xff]
    %v659 = vld [vmem:[%s5 + $0x40] sm:$0xff]
    %v660 = vld [vmem:[%s5 + $0x48] sm:$0xff]
    %v661 = vld [vmem:[%s5 + $0x50] sm:$0xff]
    %v662 = vld [vmem:[%s5 + $0x58] sm:$0xff]
    %v663 = vld [vmem:[%s5 + $0x60] sm:$0xff]
    %v664 = vld [vmem:[%s5 + $0x68] sm:$0xff]
    %v665 = vld [vmem:[%s5 + $0x70] sm:$0xff]
    %v666 = vld [vmem:[%s5 + $0x78] sm:$0xff]
    %v667 = vld [vmem:[%s5 + $0x80] sm:$0xff]
    %v668 = vld [vmem:[%s5 + $0x88] sm:$0xff]
    %v669 = vld [vmem:[%s5 + $0x90] sm:$0xff]
    %v670 = vld [vmem:[%s5 + $0x98] sm:$0xff]
    %v671 = vld [vmem:[%s5 + $0xa0] sm:$0xff]
    %v672 = vld [vmem:[%s5 + $0xa8] sm:$0xff]
    %v673 = vld [vmem:[%s5 + $0xb0] sm:$0xff]
    %v674 = vld [vmem:[%s5 + $0xb8] sm:$0xff]
    %v675 = vld [vmem:[%s5 + $0xc0] sm:$0xff]
    %v676 = vld [vmem:[%s5 + $0xc8] sm:$0xff]
    %v677 = vld [vmem:[%s5 + $0xd0] sm:$0xff]
    %v678 = vld [vmem:[%s5 + $0xd8] sm:$0xff]
    %v679 = vld [vmem:[%s5 + $0xe0] sm:$0xff]
    %v680 = vld [vmem:[%s5 + $0xe8] sm:$0xff]
    %v681 = vld [vmem:[#allocation13 + $0x2] ss:$0 sm:$0xff]
    %vm682 = vcmask 916480
    %v684 = vsel %vm682, %v650, 0
    %686 = vmatprep.subr.mxu0 0.0
    %687 = vmatpush1.msra.mxu0 %v651
    %688 = vmatprep.subr.mxu0 0.0
    %689 = vmatpush1.msra.mxu0 %v652
    %690 = vmatprep.subr.mxu0 0.0
    %691 = vmatpush1.msra.mxu0 %v653
    %692 = vmatprep.subr.mxu0 0.0
    %693 = vmatpush1.msra.mxu0 %v654
    %694 = vmatprep.subr.mxu0 0.0
    %695 = vmatpush1.msra.mxu0 %v655
    %696 = vmatprep.subr.mxu0 0.0
    %697 = vmatpush1.msra.mxu0 %v656
    %698 = vmatprep.subr.mxu0 0.0
    %699 = vmatpush1.msra.mxu0 %v657
    %700 = vmatprep.subr.mxu0 0.0
    %701 = vmatpush1.msra.mxu0 %v658
    %702 = vmatprep.subr.mxu0 0.0
    %703 = vmatpush1.msra.mxu0 %v659
    %704 = vmatprep.subr.mxu0 0.0
    %705 = vmatpush1.msra.mxu0 %v660
    %706 = vmatprep.subr.mxu0 0.0
    %707 = vmatpush1.msra.mxu0 %v661
    %708 = vmatprep.subr.mxu0 0.0
    %709 = vmatpush1.msra.mxu0 %v662
    %710 = vmatprep.subr.mxu0 0.0
    %711 = vmatpush1.msra.mxu0 %v663
    %712 = vmatprep.subr.mxu0 0.0
    %713 = vmatpush1.msra.mxu0 %v664
    %714 = vmatprep.subr.mxu0 0.0
    %715 = vmatpush1.msra.mxu0 %v665
    %716 = vmatprep.subr.mxu0 0.0
    %717 = vmatpush1.msra.mxu0 %v666
    %718 = vmatprep.subr.mxu0 0.0
    %719 = vmatpush1.msra.mxu0 %v667
    %720 = vmatprep.subr.mxu0 0.0
    %721 = vmatpush1.msra.mxu0 %v668
    %722 = vmatprep.subr.mxu0 0.0
    %723 = vmatpush1.msra.mxu0 %v669
    %724 = vmatprep.subr.mxu0 0.0
    %725 = vmatpush1.msra.mxu0 %v670
    %726 = vmatprep.subr.mxu0 0.0
    %727 = vmatpush1.msra.mxu0 %v671
    %728 = vmatprep.subr.mxu0 0.0
    %729 = vmatpush1.msra.mxu0 %v672
    %730 = vmatprep.subr.mxu0 0.0
    %731 = vmatpush1.msra.mxu0 %v673
    %732 = vmatprep.subr.mxu0 0.0
    %733 = vmatpush1.msra.mxu0 %v674
    %734 = vmatprep.subr.mxu0 0.0
    %735 = vmatpush1.msra.mxu0 %v675
    %736 = vmatprep.subr.mxu0 0.0
    %737 = vmatpush1.msra.mxu0 %v676
    %738 = vmatprep.subr.mxu0 0.0
    %739 = vmatpush1.msra.mxu0 %v677
    %740 = vmatprep.subr.mxu0 0.0
    %741 = vmatpush1.msra.mxu0 %v678
    %742 = vmatprep.subr.mxu0 0.0
    %743 = vmatpush1.msra.mxu0 %v679
    %744 = vmatprep.subr.mxu0 0.0
    %745 = vmatpush1.msra.mxu0 %v680
    %746 = vmatprep.subr.mxu0 0.0
    %747 = vmatpush1.msra.mxu0 0.0
    %748 = vmatprep.subr.mxu0 0.0
    %749 = vmatpush1.msra.mxu0 0.0
    %750 = vmatprep.mubr.f32.mxu0 %v684
    %751 = vmatmul.mubr.f32.gmra.mrb[0].mxu0 %v649
    %v752 = vpop.f32.mrb[0].mxu0
    %v753 = vadd.f32 %v681, %v752
    %v754 = vpop.f32.mrb[0].mxu0
    %755 = vdwg.mxu0
    %v756 = vld [vmem:[%s2] sm:$0x3]
    %v757 = vld [vmem:[#allocation5] sm:$0xff]
    %v758 = vld [vmem:[#allocation5 + $0x8] sm:$0xff]
    %v759 = vld [vmem:[#allocation5 + $0x10] sm:$0xff]
    %v760 = vld [vmem:[#allocation5 + $0x18] sm:$0xff]
    %v761 = vld [vmem:[#allocation5 + $0x20] sm:$0xff]
    %v762 = vld [vmem:[#allocation5 + $0x28] sm:$0xff]
    %v763 = vld [vmem:[#allocation5 + $0x30] sm:$0x3]
    %v764 = vld [vmem:[#allocation13 + $0x3] ss:$0 sm:$0xff]
    %vm765 = vcmask 408576
    %v767 = vsel %vm765, %v756, 0
    %vm769 = vcmask 1041408
    %v771 = vsel %vm769, %v763, 0
    %773 = vmatprep.subr.mxu0 0.0
    %774 = vmatpush1.msra.mxu0 %v757
    %775 = vmatprep.subr.mxu0 0.0
    %776 = vmatpush1.msra.mxu0 %v758
    %777 = vmatprep.subr.mxu0 0.0
    %778 = vmatpush1.msra.mxu0 %v759
    %779 = vmatprep.subr.mxu0 0.0
    %780 = vmatpush1.msra.mxu0 %v760
    %781 = vmatprep.subr.mxu0 0.0
    %782 = vmatpush1.msra.mxu0 %v761
    %783 = vmatprep.subr.mxu0 0.0
    %784 = vmatpush1.msra.mxu0 %v762
    %785 = vmatprep.subr.mxu0 0.0
    %786 = vmatpush1.msra.mxu0 %v771
    %787 = vmatprep.subr.mxu0 0.0
    %788 = vmatpush1.msra.mxu0 0.0
    %789 = vmatprep.subr.mxu0 0.0
    %790 = vmatpush1.msra.mxu0 0.0
    %791 = vmatprep.subr.mxu0 0.0
    %792 = vmatpush1.msra.mxu0 0.0
    %793 = vmatprep.subr.mxu0 0.0
    %794 = vmatpush1.msra.mxu0 0.0
    %795 = vmatprep.subr.mxu0 0.0
    %796 = vmatpush1.msra.mxu0 0.0
    %797 = vmatprep.subr.mxu0 0.0
    %798 = vmatpush1.msra.mxu0 0.0
    %799 = vmatprep.subr.mxu0 0.0
    %800 = vmatpush1.msra.mxu0 0.0
    %801 = vmatprep.subr.mxu0 0.0
    %802 = vmatpush1.msra.mxu0 0.0
    %803 = vmatprep.subr.mxu0 0.0
    %804 = vmatpush1.msra.mxu0 0.0
    %805 = vmatprep.subr.mxu0 0.0
    %806 = vmatpush1.msra.mxu0 0.0
    %807 = vmatprep.subr.mxu0 0.0
    %808 = vmatpush1.msra.mxu0 0.0
    %809 = vmatprep.subr.mxu0 0.0
    %810 = vmatpush1.msra.mxu0 0.0
    %811 = vmatprep.subr.mxu0 0.0
    %812 = vmatpush1.msra.mxu0 0.0
    %813 = vmatprep.subr.mxu0 0.0
    %814 = vmatpush1.msra.mxu0 0.0
    %815 = vmatprep.subr.mxu0 0.0
    %816 = vmatpush1.msra.mxu0 0.0
    %817 = vmatprep.subr.mxu0 0.0
    %818 = vmatpush1.msra.mxu0 0.0
    %819 = vmatprep.subr.mxu0 0.0
    %820 = vmatpush1.msra.mxu0 0.0
    %821 = vmatprep.subr.mxu0 0.0
    %822 = vmatpush1.msra.mxu0 0.0
    %823 = vmatprep.subr.mxu0 0.0
    %824 = vmatpush1.msra.mxu0 0.0
    %825 = vmatprep.subr.mxu0 0.0
    %826 = vmatpush1.msra.mxu0 0.0
    %827 = vmatprep.subr.mxu0 0.0
    %828 = vmatpush1.msra.mxu0 0.0
    %829 = vmatprep.subr.mxu0 0.0
    %830 = vmatpush1.msra.mxu0 0.0
    %831 = vmatprep.subr.mxu0 0.0
    %832 = vmatpush1.msra.mxu0 0.0
    %833 = vmatprep.subr.mxu0 0.0
    %834 = vmatpush1.msra.mxu0 0.0
    %835 = vmatprep.subr.mxu0 0.0
    %836 = vmatpush1.msra.mxu0 0.0
    %837 = vmatprep.mubr.f32.mxu0 0.0
    %838 = vmatmul.mubr.f32.gmra.mrb[0].mxu0 %v767
    %v839 = vpop.f32.mrb[0].mxu0
    %v840 = vadd.f32 %v764, %v839
    %v841 = vpop.f32.mrb[0].mxu0
    %842 = vdwg.mxu0
    %vm843 = vcmp.gt.f32.partialorder %v840, 0.0
    %v844 = vmul.f32 %v840, 0.01
    %v845 = vsel %vm843, %v840, %v844
    %v846 = vld [vmem:[%s7] sm:$0xff]
    %v847 = vld [vmem:[%s7 + $0x8] sm:$0xff]
    %v848 = vld [vmem:[%s7 + $0x10] sm:$0xff]
    %v849 = vld [vmem:[%s7 + $0x18] sm:$0xff]
    %v850 = vld [vmem:[%s7 + $0x20] sm:$0xff]
    %v851 = vld [vmem:[%s7 + $0x28] sm:$0xff]
    %v852 = vld [vmem:[%s7 + $0x30] sm:$0xff]
    %v853 = vld [vmem:[%s7 + $0x38] sm:$0xff]
    %v854 = vld [vmem:[#allocation13 + $0x4] ss:$0 sm:$0xff]
    %v856 = vsel %vm499, %v845, 0
    %858 = vmatprep.subr.mxu0 0.0
    %859 = vmatpush1.msra.mxu0 %v846
    %860 = vmatprep.subr.mxu0 0.0
    %861 = vmatpush1.msra.mxu0 %v847
    %862 = vmatprep.subr.mxu0 0.0
    %863 = vmatpush1.msra.mxu0 %v848
    %864 = vmatprep.subr.mxu0 0.0
    %865 = vmatpush1.msra.mxu0 %v849
    %866 = vmatprep.subr.mxu0 0.0
    %867 = vmatpush1.msra.mxu0 %v850
    %868 = vmatprep.subr.mxu0 0.0
    %869 = vmatpush1.msra.mxu0 %v851
    %870 = vmatprep.subr.mxu0 0.0
    %871 = vmatpush1.msra.mxu0 %v852
    %872 = vmatprep.subr.mxu0 0.0
    %873 = vmatpush1.msra.mxu0 %v853
    %874 = vmatprep.subr.mxu0 0.0
    %875 = vmatpush1.msra.mxu0 0.0
    %876 = vmatprep.subr.mxu0 0.0
    %877 = vmatpush1.msra.mxu0 0.0
    %878 = vmatprep.subr.mxu0 0.0
    %879 = vmatpush1.msra.mxu0 0.0
    %880 = vmatprep.subr.mxu0 0.0
    %881 = vmatpush1.msra.mxu0 0.0
    %882 = vmatprep.subr.mxu0 0.0
    %883 = vmatpush1.msra.mxu0 0.0
    %884 = vmatprep.subr.mxu0 0.0
    %885 = vmatpush1.msra.mxu0 0.0
    %886 = vmatprep.subr.mxu0 0.0
    %887 = vmatpush1.msra.mxu0 0.0
    %888 = vmatprep.subr.mxu0 0.0
    %889 = vmatpush1.msra.mxu0 0.0
    %890 = vmatprep.subr.mxu0 0.0
    %891 = vmatpush1.msra.mxu0 0.0
    %892 = vmatprep.subr.mxu0 0.0
    %893 = vmatpush1.msra.mxu0 0.0
    %894 = vmatprep.subr.mxu0 0.0
    %895 = vmatpush1.msra.mxu0 0.0
    %896 = vmatprep.subr.mxu0 0.0
    %897 = vmatpush1.msra.mxu0 0.0
    %898 = vmatprep.subr.mxu0 0.0
    %899 = vmatpush1.msra.mxu0 0.0
    %900 = vmatprep.subr.mxu0 0.0
    %901 = vmatpush1.msra.mxu0 0.0
    %902 = vmatprep.subr.mxu0 0.0
    %903 = vmatpush1.msra.mxu0 0.0
    %904 = vmatprep.subr.mxu0 0.0
    %905 = vmatpush1.msra.mxu0 0.0
    %906 = vmatprep.subr.mxu0 0.0
    %907 = vmatpush1.msra.mxu0 0.0
    %908 = vmatprep.subr.mxu0 0.0
    %909 = vmatpush1.msra.mxu0 0.0
    %910 = vmatprep.subr.mxu0 0.0
    %911 = vmatpush1.msra.mxu0 0.0
    %912 = vmatprep.subr.mxu0 0.0
    %913 = vmatpush1.msra.mxu0 0.0
    %914 = vmatprep.subr.mxu0 0.0
    %915 = vmatpush1.msra.mxu0 0.0
    %916 = vmatprep.subr.mxu0 0.0
    %917 = vmatpush1.msra.mxu0 0.0
    %918 = vmatprep.subr.mxu0 0.0
    %919 = vmatpush1.msra.mxu0 0.0
    %920 = vmatprep.subr.mxu0 0.0
    %921 = vmatpush1.msra.mxu0 0.0
    %922 = vmatprep.mubr.f32.mxu0 0.0
    %923 = vmatmul.mubr.f32.gmra.mrb[0].mxu0 %v856
    %v924 = vpop.f32.mrb[0].mxu0
    %v925 = vadd.f32 %v854, %v924
    %v926 = vpop.f32.mrb[0].mxu0
    %927 = vdwg.mxu0
    %vm928 = vcmp.gt.f32.partialorder %v925, 0.0
    %v929 = vmul.f32 %v925, 0.01
    %v930 = vsel %vm928, %v925, %v929
    %v931 = vld [vmem:[%s8] sm:$0xff]
    %v932 = vld [vmem:[%s8 + $0x8] sm:$0xff]
    %v933 = vld [vmem:[%s8 + $0x10] sm:$0xff]
    %v934 = vld [vmem:[%s8 + $0x18] sm:$0xff]
    %v935 = vld [vmem:[#allocation13 + $0x5] ss:$0 sm:$0xff]
    %vm936 = vcmask 261120
    %v938 = vsel %vm936, %v930, 0
    %940 = vmatprep.subr.mxu0 0.0
    %941 = vmatpush1.msra.mxu0 %v931
    %942 = vmatprep.subr.mxu0 0.0
    %943 = vmatpush1.msra.mxu0 %v932
    %944 = vmatprep.subr.mxu0 0.0
    %945 = vmatpush1.msra.mxu0 %v933
    %946 = vmatprep.subr.mxu0 0.0
    %947 = vmatpush1.msra.mxu0 %v934
    %948 = vmatprep.subr.mxu0 0.0
    %949 = vmatpush1.msra.mxu0 0.0
    %950 = vmatprep.subr.mxu0 0.0
    %951 = vmatpush1.msra.mxu0 0.0
    %952 = vmatprep.subr.mxu0 0.0
    %953 = vmatpush1.msra.mxu0 0.0
    %954 = vmatprep.subr.mxu0 0.0
    %955 = vmatpush1.msra.mxu0 0.0
    %956 = vmatprep.subr.mxu0 0.0
    %957 = vmatpush1.msra.mxu0 0.0
    %958 = vmatprep.subr.mxu0 0.0
    %959 = vmatpush1.msra.mxu0 0.0
    %960 = vmatprep.subr.mxu0 0.0
    %961 = vmatpush1.msra.mxu0 0.0
    %962 = vmatprep.subr.mxu0 0.0
    %963 = vmatpush1.msra.mxu0 0.0
    %964 = vmatprep.subr.mxu0 0.0
    %965 = vmatpush1.msra.mxu0 0.0
    %966 = vmatprep.subr.mxu0 0.0
    %967 = vmatpush1.msra.mxu0 0.0
    %968 = vmatprep.subr.mxu0 0.0
    %969 = vmatpush1.msra.mxu0 0.0
    %970 = vmatprep.subr.mxu0 0.0
    %971 = vmatpush1.msra.mxu0 0.0
    %972 = vmatprep.subr.mxu0 0.0
    %973 = vmatpush1.msra.mxu0 0.0
    %974 = vmatprep.subr.mxu0 0.0
    %975 = vmatpush1.msra.mxu0 0.0
    %976 = vmatprep.subr.mxu0 0.0
    %977 = vmatpush1.msra.mxu0 0.0
    %978 = vmatprep.subr.mxu0 0.0
    %979 = vmatpush1.msra.mxu0 0.0
    %980 = vmatprep.subr.mxu0 0.0
    %981 = vmatpush1.msra.mxu0 0.0
    %982 = vmatprep.subr.mxu0 0.0
    %983 = vmatpush1.msra.mxu0 0.0
    %984 = vmatprep.subr.mxu0 0.0
    %985 = vmatpush1.msra.mxu0 0.0
    %986 = vmatprep.subr.mxu0 0.0
    %987 = vmatpush1.msra.mxu0 0.0
    %988 = vmatprep.subr.mxu0 0.0
    %989 = vmatpush1.msra.mxu0 0.0
    %990 = vmatprep.subr.mxu0 0.0
    %991 = vmatpush1.msra.mxu0 0.0
    %992 = vmatprep.subr.mxu0 0.0
    %993 = vmatpush1.msra.mxu0 0.0
    %994 = vmatprep.subr.mxu0 0.0
    %995 = vmatpush1.msra.mxu0 0.0
    %996 = vmatprep.subr.mxu0 0.0
    %997 = vmatpush1.msra.mxu0 0.0
    %998 = vmatprep.subr.mxu0 0.0
    %999 = vmatpush1.msra.mxu0 0.0
    %1000 = vmatprep.subr.mxu0 0.0
    %1001 = vmatpush1.msra.mxu0 0.0
    %1002 = vmatprep.subr.mxu0 0.0
    %1003 = vmatpush1.msra.mxu0 0.0
    %1004 = vmatprep.mubr.f32.mxu0 0.0
    %1005 = vmatmul.mubr.f32.gmra.mrb[0].mxu0 %v938
    %v1006 = vpop.f32.mrb[0].mxu0
    %v1007 = vadd.f32 %v935, %v1006
    %v1008 = vpop.f32.mrb[0].mxu0
    %1009 = vdwg.mxu0
    %v1010 = vld [vmem:[#allocation8] sm:$0xff]
    %v1011 = vld [vmem:[#allocation8 + $0x8] sm:$0xff]
    %v1012 = vld [vmem:[#allocation8 + $0x10] sm:$0xff]
    %v1013 = vld [vmem:[#allocation8 + $0x18] sm:$0xff]
    %v1014 = vld [vmem:[#allocation8 + $0x20] sm:$0xff]
    %v1015 = vld [vmem:[#allocation8 + $0x28] sm:$0xff]
    %v1016 = vld [vmem:[#allocation8 + $0x30] sm:$0xff]
    %v1017 = vld [vmem:[#allocation8 + $0x38] sm:$0xff]
    %v1018 = vld [vmem:[#allocation8 + $0x40] sm:$0xff]
    %v1019 = vld [vmem:[#allocation8 + $0x48] sm:$0xff]
    %v1020 = vld [vmem:[#allocation8 + $0x50] sm:$0xff]
    %v1021 = vld [vmem:[#allocation8 + $0x58] sm:$0xff]
    %v1022 = vld [vmem:[#allocation8 + $0x60] sm:$0xff]
    %v1023 = vld [vmem:[#allocation8 + $0x68] sm:$0xff]
    %v1024 = vld [vmem:[#allocation8 + $0x70] sm:$0xff]
    %v1025 = vld [vmem:[#allocation8 + $0x78] sm:$0xff]
    %v1026 = vld [vmem:[#allocation8 + $0x80] sm:$0xff]
    %v1027 = vld [vmem:[#allocation8 + $0x88] sm:$0xff]
    %v1028 = vld [vmem:[#allocation8 + $0x90] sm:$0xff]
    %v1029 = vld [vmem:[#allocation8 + $0x98] sm:$0xff]
    %v1030 = vld [vmem:[#allocation8 + $0xa0] sm:$0xff]
    %v1031 = vld [vmem:[#allocation8 + $0xa8] sm:$0xff]
    %v1032 = vld [vmem:[#allocation8 + $0xb0] sm:$0xff]
    %v1033 = vld [vmem:[#allocation8 + $0xb8] sm:$0xff]
    %v1034 = vld [vmem:[#allocation10] sm:$0xff]
    %v1035 = vld [vmem:[#allocation10 + $0x8] sm:$0xff]
    %v1036 = vld [vmem:[#allocation10 + $0x10] sm:$0xff]
    %v1037 = vld [vmem:[#allocation10 + $0x18] sm:$0xff]
    %v1038 = vld [vmem:[#allocation10 + $0x20] sm:$0xff]
    %v1039 = vld [vmem:[#allocation10 + $0x28] sm:$0xff]
    %v1040 = vld [vmem:[%s0] sm:$0xf]
    %v1041 = vld [vmem:[#allocation7] sm:$0xff]
    %v1042 = vld [vmem:[#allocation7 + $0x8] sm:$0xff]
    %v1043 = vld [vmem:[#allocation7 + $0x10] sm:$0xff]
    %v1044 = vld [vmem:[#allocation7 + $0x18] sm:$0xff]
    %v1045 = vld [vmem:[#allocation7 + $0x20] sm:$0xff]
    %v1046 = vld [vmem:[#allocation7 + $0x28] sm:$0xff]
    %v1047 = vld [vmem:[#allocation7 + $0x30] sm:$0xff]
    %v1048 = vld [vmem:[#allocation7 + $0x38] sm:$0xff]
    %v1049 = vld [vmem:[#allocation7 + $0x40] sm:$0xff]
    %v1050 = vld [vmem:[#allocation7 + $0x48] sm:$0xff]
    %v1051 = vld [vmem:[#allocation7 + $0x50] sm:$0xff]
    %v1052 = vld [vmem:[#allocation7 + $0x58] sm:$0xff]
    %v1053 = vld [vmem:[#allocation7 + $0x60] sm:$0xff]
    %v1054 = vld [vmem:[#allocation7 + $0x68] sm:$0xff]
    %v1055 = vld [vmem:[#allocation7 + $0x70] sm:$0xff]
    %v1056 = vld [vmem:[#allocation7 + $0x78] sm:$0xff]
    %v1057 = vld [vmem:[#allocation7 + $0x80] sm:$0xff]
    %v1058 = vld [vmem:[#allocation7 + $0x88] sm:$0xff]
    %v1059 = vld [vmem:[#allocation7 + $0x90] sm:$0xff]
    %v1060 = vld [vmem:[#allocation7 + $0x98] sm:$0xff]
    %v1061 = vld [vmem:[#allocation7 + $0xa0] sm:$0xff]
    %v1062 = vld [vmem:[#allocation7 + $0xa8] sm:$0xff]
    %v1063 = vld [vmem:[#allocation7 + $0xb0] sm:$0xff]
    %v1064 = vld [vmem:[#allocation7 + $0xb8] sm:$0xff]
    %v1065 = vld [vmem:[#allocation7 + $0xc0] sm:$0xff]
    %v1066 = vld [vmem:[#allocation7 + $0xc8] sm:$0xff]
    %v1067 = vld [vmem:[#allocation7 + $0xd0] sm:$0xff]
    %v1068 = vld [vmem:[#allocation7 + $0xd8] sm:$0xff]
    %v1069 = vld [vmem:[#allocation7 + $0xe0] sm:$0xff]
    %v1070 = vld [vmem:[#allocation7 + $0xe8] sm:$0xff]
    %v1071 = vld [vmem:[#allocation7 + $0xf0] sm:$0xff]
    %v1072 = vld [vmem:[#allocation7 + $0xf8] sm:$0xff]
    %v1073 = vld [vmem:[#allocation7 + $0x100] sm:$0x1f]
    %v1074 = vld [vmem:[#allocation7 + $0x108] sm:$0x1f]
    %s1075 = scalar_lea.vmem [#allocation13], 6
    %v1076 = vld [vmem:[%s1075] ss:$8 sm:$0x3]
    %v1078 = vlaneseq
    %v1079 = vshrl.u32 %v1078, 7
    %v1080 = vsub.s32 0, %v1079
    %v1081 = vrot.slane %v1076, %v1080
    %v1082 = vlaneseq
    %v1083 = vshrl.u32 %v1082, 7
    %v1084 = vsub.s32 1, %v1083
    %v1085 = vrot.slane %v1076, %v1084
    %v1090 = vunpack.c.l.s4 1983009808
    %v1091 = vunpack.c.0.s8 %v1090
    %v1092 = vlaneseq
    %v1093 = vshrl.u32 %v1092, 7
    %v1094 = vsub.s32 %v1091, %v1093
    %v1095 = vrot.slane %v1040, %v1094
    %v1096 = vcombine.high %v1095, %v1095
    %vm1098 = vcmask 39936
    %v1099 = vsel %vm1098, %v1096, 0
    %vm1101 = vcmask 1044480
    %v1103 = vsel %vm1101, %v1073, 0
    %v1106 = vsel %vm1101, %v1074, 0
    %1108 = vmatprep.subr.mxu0 %v1042
    %1109 = vmatpush1.msra.mxu0 %v1041
    %1110 = vmatprep.subr.mxu0 %v1044
    %1111 = vmatpush1.msra.mxu0 %v1043
    %1112 = vmatprep.subr.mxu0 %v1046
    %1113 = vmatpush1.msra.mxu0 %v1045
    %1114 = vmatprep.subr.mxu0 %v1048
    %1115 = vmatpush1.msra.mxu0 %v1047
    %1116 = vmatprep.subr.mxu0 %v1050
    %1117 = vmatpush1.msra.mxu0 %v1049
    %1118 = vmatprep.subr.mxu0 %v1052
    %1119 = vmatpush1.msra.mxu0 %v1051
    %1120 = vmatprep.subr.mxu0 %v1054
    %1121 = vmatpush1.msra.mxu0 %v1053
    %1122 = vmatprep.subr.mxu0 %v1056
    %1123 = vmatpush1.msra.mxu0 %v1055
    %1124 = vmatprep.subr.mxu0 %v1058
    %1125 = vmatpush1.msra.mxu0 %v1057
    %1126 = vmatprep.subr.mxu0 %v1060
    %1127 = vmatpush1.msra.mxu0 %v1059
    %1128 = vmatprep.subr.mxu0 %v1062
    %1129 = vmatpush1.msra.mxu0 %v1061
    %1130 = vmatprep.subr.mxu0 %v1064
    %1131 = vmatpush1.msra.mxu0 %v1063
    %1132 = vmatprep.subr.mxu0 %v1066
    %1133 = vmatpush1.msra.mxu0 %v1065
    %1134 = vmatprep.subr.mxu0 %v1068
    %1135 = vmatpush1.msra.mxu0 %v1067
    %1136 = vmatprep.subr.mxu0 %v1070
    %1137 = vmatpush1.msra.mxu0 %v1069
    %1138 = vmatprep.subr.mxu0 %v1072
    %1139 = vmatpush1.msra.mxu0 %v1071
    %1140 = vmatprep.subr.mxu0 %v1106
    %1141 = vmatpush1.msra.mxu0 %v1103
    %1142 = vmatprep.subr.mxu0 0.0
    %1143 = vmatpush1.msra.mxu0 0.0
    %1144 = vmatprep.subr.mxu0 0.0
    %1145 = vmatpush1.msra.mxu0 0.0
    %1146 = vmatprep.subr.mxu0 0.0
    %1147 = vmatpush1.msra.mxu0 0.0
    %1148 = vmatprep.subr.mxu0 0.0
    %1149 = vmatpush1.msra.mxu0 0.0
    %1150 = vmatprep.subr.mxu0 0.0
    %1151 = vmatpush1.msra.mxu0 0.0
    %1152 = vmatprep.subr.mxu0 0.0
    %1153 = vmatpush1.msra.mxu0 0.0
    %1154 = vmatprep.subr.mxu0 0.0
    %1155 = vmatpush1.msra.mxu0 0.0
    %1156 = vmatprep.subr.mxu0 0.0
    %1157 = vmatpush1.msra.mxu0 0.0
    %1158 = vmatprep.subr.mxu0 0.0
    %1159 = vmatpush1.msra.mxu0 0.0
    %1160 = vmatprep.subr.mxu0 0.0
    %1161 = vmatpush1.msra.mxu0 0.0
    %1162 = vmatprep.subr.mxu0 0.0
    %1163 = vmatpush1.msra.mxu0 0.0
    %1164 = vmatprep.subr.mxu0 0.0
    %1165 = vmatpush1.msra.mxu0 0.0
    %1166 = vmatprep.subr.mxu0 0.0
    %1167 = vmatpush1.msra.mxu0 0.0
    %1168 = vmatprep.subr.mxu0 0.0
    %1169 = vmatpush1.msra.mxu0 0.0
    %1170 = vmatprep.subr.mxu0 0.0
    %1171 = vmatpush1.msra.mxu0 0.0
    %1172 = vmatprep.mubr.f32.mxu0 %v1099
    %1173 = vmatmul.mubr.f32.gmra.mrb[0].mxu0 %v1095
    %v1174 = vpop.f32.mrb[0].mxu0
    %v1175 = vadd.f32 %v1081, %v1174
    %v1176 = vpop.f32.mrb[0].mxu0
    %v1177 = vadd.f32 %v1085, %v1176
    %1178 = vdwg.mxu0
    %vm1179 = vcmask 785408
    %v1181 = vsel %vm1179, %v753, 0
    %1183 = vmatprep.subr.mxu0 %v1011
    %1184 = vmatpush1.msra.mxu0 %v1010
    %1185 = vmatprep.subr.mxu0 %v1013
    %1186 = vmatpush1.msra.mxu0 %v1012
    %1187 = vmatprep.subr.mxu0 %v1015
    %1188 = vmatpush1.msra.mxu0 %v1014
    %1189 = vmatprep.subr.mxu0 %v1017
    %1190 = vmatpush1.msra.mxu0 %v1016
    %1191 = vmatprep.subr.mxu0 %v1019
    %1192 = vmatpush1.msra.mxu0 %v1018
    %1193 = vmatprep.subr.mxu0 %v1021
    %1194 = vmatpush1.msra.mxu0 %v1020
    %1195 = vmatprep.subr.mxu0 %v1023
    %1196 = vmatpush1.msra.mxu0 %v1022
    %1197 = vmatprep.subr.mxu0 %v1025
    %1198 = vmatpush1.msra.mxu0 %v1024
    %1199 = vmatprep.subr.mxu0 %v1027
    %1200 = vmatpush1.msra.mxu0 %v1026
    %1201 = vmatprep.subr.mxu0 %v1029
    %1202 = vmatpush1.msra.mxu0 %v1028
    %1203 = vmatprep.subr.mxu0 %v1031
    %1204 = vmatpush1.msra.mxu0 %v1030
    %1205 = vmatprep.subr.mxu0 %v1033
    %1206 = vmatpush1.msra.mxu0 %v1032
    %1207 = vmatprep.subr.mxu0 0.0
    %1208 = vmatpush1.msra.mxu0 0.0
    %1209 = vmatprep.subr.mxu0 0.0
    %1210 = vmatpush1.msra.mxu0 0.0
    %1211 = vmatprep.subr.mxu0 0.0
    %1212 = vmatpush1.msra.mxu0 0.0
    %1213 = vmatprep.subr.mxu0 0.0
    %1214 = vmatpush1.msra.mxu0 0.0
    %1215 = vmatprep.subr.mxu0 0.0
    %1216 = vmatpush1.msra.mxu0 0.0
    %1217 = vmatprep.subr.mxu0 0.0
    %1218 = vmatpush1.msra.mxu0 0.0
    %1219 = vmatprep.subr.mxu0 0.0
    %1220 = vmatpush1.msra.mxu0 0.0
    %1221 = vmatprep.subr.mxu0 0.0
    %1222 = vmatpush1.msra.mxu0 0.0
    %1223 = vmatprep.subr.mxu0 0.0
    %1224 = vmatpush1.msra.mxu0 0.0
    %1225 = vmatprep.subr.mxu0 0.0
    %1226 = vmatpush1.msra.mxu0 0.0
    %1227 = vmatprep.subr.mxu0 0.0
    %1228 = vmatpush1.msra.mxu0 0.0
    %1229 = vmatprep.subr.mxu0 0.0
    %1230 = vmatpush1.msra.mxu0 0.0
    %1231 = vmatprep.subr.mxu0 0.0
    %1232 = vmatpush1.msra.mxu0 0.0
    %1233 = vmatprep.subr.mxu0 0.0
    %1234 = vmatpush1.msra.mxu0 0.0
    %1235 = vmatprep.subr.mxu0 0.0
    %1236 = vmatpush1.msra.mxu0 0.0
    %1237 = vmatprep.subr.mxu0 0.0
    %1238 = vmatpush1.msra.mxu0 0.0
    %1239 = vmatprep.subr.mxu0 0.0
    %1240 = vmatpush1.msra.mxu0 0.0
    %1241 = vmatprep.subr.mxu0 0.0
    %1242 = vmatpush1.msra.mxu0 0.0
    %1243 = vmatprep.subr.mxu0 0.0
    %1244 = vmatpush1.msra.mxu0 0.0
    %1245 = vmatprep.subr.mxu0 0.0
    %1246 = vmatpush1.msra.mxu0 0.0
    %1247 = vmatprep.mubr.f32.mxu0 0.0
    %1248 = vmatmul.mubr.f32.gmra.mrb[0].mxu0 %v1181
    %v1249 = vpop.f32.mrb[0].mxu0
    %v1250 = vadd.f32 0.0, %v1249
    %v1251 = vpop.f32.mrb[0].mxu0
    %v1252 = vadd.f32 0.0, %v1251
    %1253 = vdwg.mxu0
    %v1254 = vadd.f32 %v1175, %v1250
    %v1255 = vadd.f32 %v1177, %v1252
    %vm1256 = vcmask 195584
    %v1258 = vsel %vm1256, %v1007, 0
    %1260 = vmatprep.subr.mxu0 %v1035
    %1261 = vmatpush1.msra.mxu0 %v1034
    %1262 = vmatprep.subr.mxu0 %v1037
    %1263 = vmatpush1.msra.mxu0 %v1036
    %1264 = vmatprep.subr.mxu0 %v1039
    %1265 = vmatpush1.msra.mxu0 %v1038
    %1266 = vmatprep.subr.mxu0 0.0
    %1267 = vmatpush1.msra.mxu0 0.0
    %1268 = vmatprep.subr.mxu0 0.0
    %1269 = vmatpush1.msra.mxu0 0.0
    %1270 = vmatprep.subr.mxu0 0.0
    %1271 = vmatpush1.msra.mxu0 0.0
    %1272 = vmatprep.subr.mxu0 0.0
    %1273 = vmatpush1.msra.mxu0 0.0
    %1274 = vmatprep.subr.mxu0 0.0
    %1275 = vmatpush1.msra.mxu0 0.0
    %1276 = vmatprep.subr.mxu0 0.0
    %1277 = vmatpush1.msra.mxu0 0.0
    %1278 = vmatprep.subr.mxu0 0.0
    %1279 = vmatpush1.msra.mxu0 0.0
    %1280 = vmatprep.subr.mxu0 0.0
    %1281 = vmatpush1.msra.mxu0 0.0
    %1282 = vmatprep.subr.mxu0 0.0
    %1283 = vmatpush1.msra.mxu0 0.0
    %1284 = vmatprep.subr.mxu0 0.0
    %1285 = vmatpush1.msra.mxu0 0.0
    %1286 = vmatprep.subr.mxu0 0.0
    %1287 = vmatpush1.msra.mxu0 0.0
    %1288 = vmatprep.subr.mxu0 0.0
    %1289 = vmatpush1.msra.mxu0 0.0
    %1290 = vmatprep.subr.mxu0 0.0
    %1291 = vmatpush1.msra.mxu0 0.0
    %1292 = vmatprep.subr.mxu0 0.0
    %1293 = vmatpush1.msra.mxu0 0.0
    %1294 = vmatprep.subr.mxu0 0.0
    %1295 = vmatpush1.msra.mxu0 0.0
    %1296 = vmatprep.subr.mxu0 0.0
    %1297 = vmatpush1.msra.mxu0 0.0
    %1298 = vmatprep.subr.mxu0 0.0
    %1299 = vmatpush1.msra.mxu0 0.0
    %1300 = vmatprep.subr.mxu0 0.0
    %1301 = vmatpush1.msra.mxu0 0.0
    %1302 = vmatprep.subr.mxu0 0.0
    %1303 = vmatpush1.msra.mxu0 0.0
    %1304 = vmatprep.subr.mxu0 0.0
    %1305 = vmatpush1.msra.mxu0 0.0
    %1306 = vmatprep.subr.mxu0 0.0
    %1307 = vmatpush1.msra.mxu0 0.0
    %1308 = vmatprep.subr.mxu0 0.0
    %1309 = vmatpush1.msra.mxu0 0.0
    %1310 = vmatprep.subr.mxu0 0.0
    %1311 = vmatpush1.msra.mxu0 0.0
    %1312 = vmatprep.subr.mxu0 0.0
    %1313 = vmatpush1.msra.mxu0 0.0
    %1314 = vmatprep.subr.mxu0 0.0
    %1315 = vmatpush1.msra.mxu0 0.0
    %1316 = vmatprep.subr.mxu0 0.0
    %1317 = vmatpush1.msra.mxu0 0.0
    %1318 = vmatprep.subr.mxu0 0.0
    %1319 = vmatpush1.msra.mxu0 0.0
    %1320 = vmatprep.subr.mxu0 0.0
    %1321 = vmatpush1.msra.mxu0 0.0
    %1322 = vmatprep.subr.mxu0 0.0
    %1323 = vmatpush1.msra.mxu0 0.0
    %1324 = vmatprep.mubr.f32.mxu0 0.0
    %1325 = vmatmul.mubr.f32.gmra.mrb[0].mxu0 %v1258
    %v1326 = vpop.f32.mrb[0].mxu0
    %v1327 = vadd.f32 0.0, %v1326
    %v1328 = vpop.f32.mrb[0].mxu0
    %v1329 = vadd.f32 0.0, %v1328
    %1330 = vdwg.mxu0
    %v1331 = vadd.f32 %v1254, %v1327
    %v1332 = vadd.f32 %v1255, %v1329
    %vm1333 = vcmp.gt.f32.partialorder %v1331, 0.0
    %vm1334 = vcmp.gt.f32.partialorder %v1332, 0.0
    %v1335 = vmul.f32 %v1331, 0.01
    %v1336 = vmul.f32 %v1332, 0.01
    %v1337 = vsel %vm1333, %v1331, %v1335
    %v1338 = vsel %vm1334, %v1332, %v1336
    %v1339 = vld [vmem:[%s12] sm:$0xff]
    %v1340 = vld [vmem:[%s12 + $0x8] sm:$0xff]
    %v1341 = vld [vmem:[%s12 + $0x10] sm:$0xff]
    %v1342 = vld [vmem:[%s12 + $0x18] sm:$0xff]
    %v1343 = vld [vmem:[%s12 + $0x20] sm:$0xff]
    %v1344 = vld [vmem:[%s12 + $0x28] sm:$0xff]
    %v1345 = vld [vmem:[%s12 + $0x30] sm:$0xff]
    %v1346 = vld [vmem:[%s12 + $0x38] sm:$0xff]
    %v1347 = vld [vmem:[%s12 + $0x40] sm:$0xff]
    %v1348 = vld [vmem:[%s12 + $0x48] sm:$0xff]
    %v1349 = vld [vmem:[%s12 + $0x50] sm:$0xff]
    %v1350 = vld [vmem:[%s12 + $0x58] sm:$0xff]
    %v1351 = vld [vmem:[%s12 + $0x60] sm:$0xff]
    %v1352 = vld [vmem:[%s12 + $0x68] sm:$0xff]
    %v1353 = vld [vmem:[%s12 + $0x70] sm:$0xff]
    %v1354 = vld [vmem:[%s12 + $0x78] sm:$0xff]
    %v1355 = vld [vmem:[%s12 + $0x80] sm:$0xff]
    %v1356 = vld [vmem:[%s12 + $0x88] sm:$0xff]
    %v1357 = vld [vmem:[%s12 + $0x90] sm:$0xff]
    %v1358 = vld [vmem:[%s12 + $0x98] sm:$0xff]
    %v1359 = vld [vmem:[%s12 + $0xa0] sm:$0xff]
    %v1360 = vld [vmem:[%s12 + $0xa8] sm:$0xff]
    %v1361 = vld [vmem:[%s12 + $0xb0] sm:$0xff]
    %v1362 = vld [vmem:[%s12 + $0xb8] sm:$0xff]
    %v1363 = vld [vmem:[%s12 + $0xc0] sm:$0xff]
    %v1364 = vld [vmem:[%s12 + $0xc8] sm:$0xff]
    %v1365 = vld [vmem:[%s12 + $0xd0] sm:$0xff]
    %v1366 = vld [vmem:[%s12 + $0xd8] sm:$0xff]
    %v1367 = vld [vmem:[%s12 + $0xe0] sm:$0xff]
    %v1368 = vld [vmem:[%s12 + $0xe8] sm:$0xff]
    %v1369 = vld [vmem:[%s12 + $0xf0] sm:$0xff]
    %v1370 = vld [vmem:[%s12 + $0xf8] sm:$0xff]
    %v1371 = vld [vmem:[%s12 + $0x100] sm:$0xff]
    %v1372 = vld [vmem:[%s12 + $0x108] sm:$0xff]
    %v1373 = vld [vmem:[%s12 + $0x110] sm:$0xff]
    %v1374 = vld [vmem:[%s12 + $0x118] sm:$0xff]
    %v1375 = vld [vmem:[%s12 + $0x120] sm:$0xff]
    %v1376 = vld [vmem:[%s12 + $0x128] sm:$0xff]
    %v1377 = vld [vmem:[%s12 + $0x130] sm:$0xff]
    %v1378 = vld [vmem:[%s12 + $0x138] sm:$0xff]
    %v1379 = vld [vmem:[%s12 + $0x140] sm:$0xff]
    %v1380 = vld [vmem:[%s12 + $0x148] sm:$0xff]
    %v1381 = vld [vmem:[%s12 + $0x150] sm:$0xff]
    %v1382 = vld [vmem:[%s12 + $0x158] sm:$0xff]
    %v1383 = vld [vmem:[%s12 + $0x160] sm:$0xff]
    %v1384 = vld [vmem:[%s12 + $0x168] sm:$0xff]
    %v1385 = vld [vmem:[%s12 + $0x170] sm:$0xff]
    %v1386 = vld [vmem:[%s12 + $0x178] sm:$0xff]
    %v1387 = vld [vmem:[%s12 + $0x180] sm:$0xff]
    %v1388 = vld [vmem:[%s12 + $0x188] sm:$0xff]
    %v1389 = vld [vmem:[%s12 + $0x190] sm:$0xff]
    %v1390 = vld [vmem:[%s12 + $0x198] sm:$0xff]
    %v1391 = vld [vmem:[%s12 + $0x1a0] sm:$0xff]
    %v1392 = vld [vmem:[%s12 + $0x1a8] sm:$0xff]
    %v1393 = vld [vmem:[%s12 + $0x1b0] sm:$0xff]
    %v1394 = vld [vmem:[%s12 + $0x1b8] sm:$0xff]
    %v1395 = vld [vmem:[%s12 + $0x1c0] sm:$0xff]
    %v1396 = vld [vmem:[%s12 + $0x1c8] sm:$0xff]
    %v1397 = vld [vmem:[%s12 + $0x1d0] sm:$0xff]
    %v1398 = vld [vmem:[%s12 + $0x1d8] sm:$0xff]
    %v1399 = vld [vmem:[%s12 + $0x1e0] sm:$0xff]
    %v1400 = vld [vmem:[%s12 + $0x1e8] sm:$0xff]
    %v1401 = vld [vmem:[%s12 + $0x1f0] sm:$0xff]
    %v1402 = vld [vmem:[%s12 + $0x1f8] sm:$0xff]
    %s1403 = scalar_lea.vmem [#allocation13], 7
    %v1404 = vld [vmem:[%s1403] ss:$8 sm:$0x3]
    %v1406 = vlaneseq
    %v1407 = vshrl.u32 %v1406, 7
    %v1408 = vsub.s32 0, %v1407
    %v1409 = vrot.slane %v1404, %v1408
    %v1410 = vlaneseq
    %v1411 = vshrl.u32 %v1410, 7
    %v1412 = vsub.s32 1, %v1411
    %v1413 = vrot.slane %v1404, %v1412
    %1416 = vmatprep.subr.mxu0 %v1340
    %1417 = vmatpush1.msra.mxu0 %v1339
    %1418 = vmatprep.subr.mxu0 %v1342
    %1419 = vmatpush1.msra.mxu0 %v1341
    %1420 = vmatprep.subr.mxu0 %v1344
    %1421 = vmatpush1.msra.mxu0 %v1343
    %1422 = vmatprep.subr.mxu0 %v1346
    %1423 = vmatpush1.msra.mxu0 %v1345
    %1424 = vmatprep.subr.mxu0 %v1348
    %1425 = vmatpush1.msra.mxu0 %v1347
    %1426 = vmatprep.subr.mxu0 %v1350
    %1427 = vmatpush1.msra.mxu0 %v1349
    %1428 = vmatprep.subr.mxu0 %v1352
    %1429 = vmatpush1.msra.mxu0 %v1351
    %1430 = vmatprep.subr.mxu0 %v1354
    %1431 = vmatpush1.msra.mxu0 %v1353
    %1432 = vmatprep.subr.mxu0 %v1356
    %1433 = vmatpush1.msra.mxu0 %v1355
    %1434 = vmatprep.subr.mxu0 %v1358
    %1435 = vmatpush1.msra.mxu0 %v1357
    %1436 = vmatprep.subr.mxu0 %v1360
    %1437 = vmatpush1.msra.mxu0 %v1359
    %1438 = vmatprep.subr.mxu0 %v1362
    %1439 = vmatpush1.msra.mxu0 %v1361
    %1440 = vmatprep.subr.mxu0 %v1364
    %1441 = vmatpush1.msra.mxu0 %v1363
    %1442 = vmatprep.subr.mxu0 %v1366
    %1443 = vmatpush1.msra.mxu0 %v1365
    %1444 = vmatprep.subr.mxu0 %v1368
    %1445 = vmatpush1.msra.mxu0 %v1367
    %1446 = vmatprep.subr.mxu0 %v1370
    %1447 = vmatpush1.msra.mxu0 %v1369
    %1448 = vmatprep.subr.mxu0 %v1372
    %1449 = vmatpush1.msra.mxu0 %v1371
    %1450 = vmatprep.subr.mxu0 %v1374
    %1451 = vmatpush1.msra.mxu0 %v1373
    %1452 = vmatprep.subr.mxu0 %v1376
    %1453 = vmatpush1.msra.mxu0 %v1375
    %1454 = vmatprep.subr.mxu0 %v1378
    %1455 = vmatpush1.msra.mxu0 %v1377
    %1456 = vmatprep.subr.mxu0 %v1380
    %1457 = vmatpush1.msra.mxu0 %v1379
    %1458 = vmatprep.subr.mxu0 %v1382
    %1459 = vmatpush1.msra.mxu0 %v1381
    %1460 = vmatprep.subr.mxu0 %v1384
    %1461 = vmatpush1.msra.mxu0 %v1383
    %1462 = vmatprep.subr.mxu0 %v1386
    %1463 = vmatpush1.msra.mxu0 %v1385
    %1464 = vmatprep.subr.mxu0 %v1388
    %1465 = vmatpush1.msra.mxu0 %v1387
    %1466 = vmatprep.subr.mxu0 %v1390
    %1467 = vmatpush1.msra.mxu0 %v1389
    %1468 = vmatprep.subr.mxu0 %v1392
    %1469 = vmatpush1.msra.mxu0 %v1391
    %1470 = vmatprep.subr.mxu0 %v1394
    %1471 = vmatpush1.msra.mxu0 %v1393
    %1472 = vmatprep.subr.mxu0 %v1396
    %1473 = vmatpush1.msra.mxu0 %v1395
    %1474 = vmatprep.subr.mxu0 %v1398
    %1475 = vmatpush1.msra.mxu0 %v1397
    %1476 = vmatprep.subr.mxu0 %v1400
    %1477 = vmatpush1.msra.mxu0 %v1399
    %1478 = vmatprep.subr.mxu0 %v1402
    %1479 = vmatpush1.msra.mxu0 %v1401
    %1480 = vmatprep.mubr.f32.mxu0 %v1338
    %1481 = vmatmul.mubr.f32.gmra.mrb[0].mxu0 %v1337
    %v1482 = vpop.f32.mrb[0].mxu0
    %v1483 = vadd.f32 %v1409, %v1482
    %v1484 = vpop.f32.mrb[0].mxu0
    %v1485 = vadd.f32 %v1413, %v1484
    %1486 = vdwg.mxu0
    %vm1487 = vcmp.gt.f32.partialorder %v1483, 0.0
    %vm1488 = vcmp.gt.f32.partialorder %v1485, 0.0
    %v1489 = vmul.f32 %v1483, 0.01
    %v1490 = vmul.f32 %v1485, 0.01
    %v1491 = vsel %vm1487, %v1483, %v1489
    %v1492 = vsel %vm1488, %v1485, %v1490
    %v1493 = vld [vmem:[%s13] sm:$0xff]
    %v1494 = vld [vmem:[%s13 + $0x8] sm:$0xff]
    %v1495 = vld [vmem:[%s13 + $0x10] sm:$0xff]
    %v1496 = vld [vmem:[%s13 + $0x18] sm:$0xff]
    %v1497 = vld [vmem:[%s13 + $0x20] sm:$0xff]
    %v1498 = vld [vmem:[%s13 + $0x28] sm:$0xff]
    %v1499 = vld [vmem:[%s13 + $0x30] sm:$0xff]
    %v1500 = vld [vmem:[%s13 + $0x38] sm:$0xff]
    %v1501 = vld [vmem:[%s13 + $0x40] sm:$0xff]
    %v1502 = vld [vmem:[%s13 + $0x48] sm:$0xff]
    %v1503 = vld [vmem:[%s13 + $0x50] sm:$0xff]
    %v1504 = vld [vmem:[%s13 + $0x58] sm:$0xff]
    %v1505 = vld [vmem:[%s13 + $0x60] sm:$0xff]
    %v1506 = vld [vmem:[%s13 + $0x68] sm:$0xff]
    %v1507 = vld [vmem:[%s13 + $0x70] sm:$0xff]
    %v1508 = vld [vmem:[%s13 + $0x78] sm:$0xff]
    %v1509 = vld [vmem:[%s13 + $0x80] sm:$0xff]
    %v1510 = vld [vmem:[%s13 + $0x88] sm:$0xff]
    %v1511 = vld [vmem:[%s13 + $0x90] sm:$0xff]
    %v1512 = vld [vmem:[%s13 + $0x98] sm:$0xff]
    %v1513 = vld [vmem:[#allocation13 + $0x18] ss:$0 sm:$0xff]
    %v1515 = vsel %vm936, %v1492, 0
    %1517 = vmatprep.subr.mxu0 0.0
    %1518 = vmatpush1.msra.mxu0 %v1493
    %1519 = vmatprep.subr.mxu0 0.0
    %1520 = vmatpush1.msra.mxu0 %v1494
    %1521 = vmatprep.subr.mxu0 0.0
    %1522 = vmatpush1.msra.mxu0 %v1495
    %1523 = vmatprep.subr.mxu0 0.0
    %1524 = vmatpush1.msra.mxu0 %v1496
    %1525 = vmatprep.subr.mxu0 0.0
    %1526 = vmatpush1.msra.mxu0 %v1497
    %1527 = vmatprep.subr.mxu0 0.0
    %1528 = vmatpush1.msra.mxu0 %v1498
    %1529 = vmatprep.subr.mxu0 0.0
    %1530 = vmatpush1.msra.mxu0 %v1499
    %1531 = vmatprep.subr.mxu0 0.0
    %1532 = vmatpush1.msra.mxu0 %v1500
    %1533 = vmatprep.subr.mxu0 0.0
    %1534 = vmatpush1.msra.mxu0 %v1501
    %1535 = vmatprep.subr.mxu0 0.0
    %1536 = vmatpush1.msra.mxu0 %v1502
    %1537 = vmatprep.subr.mxu0 0.0
    %1538 = vmatpush1.msra.mxu0 %v1503
    %1539 = vmatprep.subr.mxu0 0.0
    %1540 = vmatpush1.msra.mxu0 %v1504
    %1541 = vmatprep.subr.mxu0 0.0
    %1542 = vmatpush1.msra.mxu0 %v1505
    %1543 = vmatprep.subr.mxu0 0.0
    %1544 = vmatpush1.msra.mxu0 %v1506
    %1545 = vmatprep.subr.mxu0 0.0
    %1546 = vmatpush1.msra.mxu0 %v1507
    %1547 = vmatprep.subr.mxu0 0.0
    %1548 = vmatpush1.msra.mxu0 %v1508
    %1549 = vmatprep.subr.mxu0 0.0
    %1550 = vmatpush1.msra.mxu0 %v1509
    %1551 = vmatprep.subr.mxu0 0.0
    %1552 = vmatpush1.msra.mxu0 %v1510
    %1553 = vmatprep.subr.mxu0 0.0
    %1554 = vmatpush1.msra.mxu0 %v1511
    %1555 = vmatprep.subr.mxu0 0.0
    %1556 = vmatpush1.msra.mxu0 %v1512
    %1557 = vmatprep.subr.mxu0 0.0
    %1558 = vmatpush1.msra.mxu0 0.0
    %1559 = vmatprep.subr.mxu0 0.0
    %1560 = vmatpush1.msra.mxu0 0.0
    %1561 = vmatprep.subr.mxu0 0.0
    %1562 = vmatpush1.msra.mxu0 0.0
    %1563 = vmatprep.subr.mxu0 0.0
    %1564 = vmatpush1.msra.mxu0 0.0
    %1565 = vmatprep.subr.mxu0 0.0
    %1566 = vmatpush1.msra.mxu0 0.0
    %1567 = vmatprep.subr.mxu0 0.0
    %1568 = vmatpush1.msra.mxu0 0.0
    %1569 = vmatprep.subr.mxu0 0.0
    %1570 = vmatpush1.msra.mxu0 0.0
    %1571 = vmatprep.subr.mxu0 0.0
    %1572 = vmatpush1.msra.mxu0 0.0
    %1573 = vmatprep.subr.mxu0 0.0
    %1574 = vmatpush1.msra.mxu0 0.0
    %1575 = vmatprep.subr.mxu0 0.0
    %1576 = vmatpush1.msra.mxu0 0.0
    %1577 = vmatprep.subr.mxu0 0.0
    %1578 = vmatpush1.msra.mxu0 0.0
    %1579 = vmatprep.subr.mxu0 0.0
    %1580 = vmatpush1.msra.mxu0 0.0
    %1581 = vmatprep.mubr.f32.mxu0 %v1515
    %1582 = vmatmul.mubr.f32.gmra.mrb[0].mxu0 %v1491
    %v1583 = vpop.f32.mrb[0].mxu0
    %v1584 = vadd.f32 %v1513, %v1583
    %v1585 = vpop.f32.mrb[0].mxu0
    %1586 = vdwg.mxu0
    %vm1587 = vcmp.gt.f32.partialorder %v1584, 0.0
    %v1588 = vmul.f32 %v1584, 0.01
    %v1589 = vsel %vm1587, %v1584, %v1588
    %v1590 = vld [vmem:[#allocation11] sm:$0xff]
    %v1591 = vld [vmem:[#allocation11 + $0x8] sm:$0xff]
    %v1592 = vld [vmem:[#allocation11 + $0x10] sm:$0xff]
    %v1593 = vld [vmem:[#allocation11 + $0x18] sm:$0xff]
    %v1594 = vld [vmem:[#allocation11 + $0x20] sm:$0xff]
    %v1595 = vld [vmem:[#allocation11 + $0x28] sm:$0xff]
    %v1596 = vld [vmem:[#allocation11 + $0x30] sm:$0xff]
    %v1597 = vld [vmem:[#allocation11 + $0x38] sm:$0xff]
    %v1598 = vld [vmem:[#allocation11 + $0x40] sm:$0xff]
    %v1599 = vld [vmem:[#allocation11 + $0x48] sm:$0xff]
    %v1600 = vld [vmem:[#allocation11 + $0x50] sm:$0xff]
    %v1601 = vld [vmem:[#allocation11 + $0x58] sm:$0xff]
    %v1602 = vld [vmem:[#allocation11 + $0x60] sm:$0xff]
    %v1603 = vld [vmem:[#allocation11 + $0x68] sm:$0xff]
    %v1604 = vld [vmem:[#allocation11 + $0x70] sm:$0xff]
    %v1605 = vld [vmem:[#allocation11 + $0x78] sm:$0xff]
    %v1606 = vld [vmem:[#allocation13 + $0x19] ss:$0 sm:$0xff]
    %1607 = vmatprep.subr.mxu0 0.0
    %1608 = vmatpush1.msra.mxu0 %v1590
    %1609 = vmatprep.subr.mxu0 0.0
    %1610 = vmatpush1.msra.mxu0 %v1591
    %1611 = vmatprep.subr.mxu0 0.0
    %1612 = vmatpush1.msra.mxu0 %v1592
    %1613 = vmatprep.subr.mxu0 0.0
    %1614 = vmatpush1.msra.mxu0 %v1593
    %1615 = vmatprep.subr.mxu0 0.0
    %1616 = vmatpush1.msra.mxu0 %v1594
    %1617 = vmatprep.subr.mxu0 0.0
    %1618 = vmatpush1.msra.mxu0 %v1595
    %1619 = vmatprep.subr.mxu0 0.0
    %1620 = vmatpush1.msra.mxu0 %v1596
    %1621 = vmatprep.subr.mxu0 0.0
    %1622 = vmatpush1.msra.mxu0 %v1597
    %1623 = vmatprep.subr.mxu0 0.0
    %1624 = vmatpush1.msra.mxu0 %v1598
    %1625 = vmatprep.subr.mxu0 0.0
    %1626 = vmatpush1.msra.mxu0 %v1599
    %1627 = vmatprep.subr.mxu0 0.0
    %1628 = vmatpush1.msra.mxu0 %v1600
    %1629 = vmatprep.subr.mxu0 0.0
    %1630 = vmatpush1.msra.mxu0 %v1601
    %1631 = vmatprep.subr.mxu0 0.0
    %1632 = vmatpush1.msra.mxu0 %v1602
    %1633 = vmatprep.subr.mxu0 0.0
    %1634 = vmatpush1.msra.mxu0 %v1603
    %1635 = vmatprep.subr.mxu0 0.0
    %1636 = vmatpush1.msra.mxu0 %v1604
    %1637 = vmatprep.subr.mxu0 0.0
    %1638 = vmatpush1.msra.mxu0 %v1605
    %1639 = vmatprep.subr.mxu0 0.0
    %1640 = vmatpush1.msra.mxu0 0.0
    %1641 = vmatprep.subr.mxu0 0.0
    %1642 = vmatpush1.msra.mxu0 0.0
    %1643 = vmatprep.subr.mxu0 0.0
    %1644 = vmatpush1.msra.mxu0 0.0
    %1645 = vmatprep.subr.mxu0 0.0
    %1646 = vmatpush1.msra.mxu0 0.0
    %1647 = vmatprep.subr.mxu0 0.0
    %1648 = vmatpush1.msra.mxu0 0.0
    %1649 = vmatprep.subr.mxu0 0.0
    %1650 = vmatpush1.msra.mxu0 0.0
    %1651 = vmatprep.subr.mxu0 0.0
    %1652 = vmatpush1.msra.mxu0 0.0
    %1653 = vmatprep.subr.mxu0 0.0
    %1654 = vmatpush1.msra.mxu0 0.0
    %1655 = vmatprep.subr.mxu0 0.0
    %1656 = vmatpush1.msra.mxu0 0.0
    %1657 = vmatprep.subr.mxu0 0.0
    %1658 = vmatpush1.msra.mxu0 0.0
    %1659 = vmatprep.subr.mxu0 0.0
    %1660 = vmatpush1.msra.mxu0 0.0
    %1661 = vmatprep.subr.mxu0 0.0
    %1662 = vmatpush1.msra.mxu0 0.0
    %1663 = vmatprep.subr.mxu0 0.0
    %1664 = vmatpush1.msra.mxu0 0.0
    %1665 = vmatprep.subr.mxu0 0.0
    %1666 = vmatpush1.msra.mxu0 0.0
    %1667 = vmatprep.subr.mxu0 0.0
    %1668 = vmatpush1.msra.mxu0 0.0
    %1669 = vmatprep.subr.mxu0 0.0
    %1670 = vmatpush1.msra.mxu0 0.0
    %1671 = vmatprep.mubr.f32.mxu0 0.0
    %1672 = vmatmul.mubr.f32.gmra.mrb[0].mxu0 %v1589
    %v1673 = vpop.f32.mrb[0].mxu0
    %v1674 = vadd.f32 %v1606, %v1673
    %v1675 = vpop.f32.mrb[0].mxu0
    %1676 = vdwg.mxu0
    %1677 = vst [vmem:[#allocation14] sm:$0x3] %v1674
    // Predicated region
    $region94: #{tpu_custom_call.1} parent=1 // pred_check
      _
    $region95: #{tpu_custom_call.1} parent=1 // pred_check_branch
      %1679 = sbr.rel (0) target = $region97
    $region96: #{tpu_custom_call.1} parent=1 // pred_region
      %s1681 = ssub.s32 32, 32
      %1682 = vsyncadd [#allocation4], %s1681
      %s1684 = sshll.u32 [#allocation14], 4
      %s1685 = int_to_ptr.vmem [resolvable:$true] %s1684
      %1687 = dma.vmem_to_hbm [thread:$0]  %s1685, 32, %s16, [#allocation4]
    $region97: #{tpu_custom_call.1} parent=1 // pred_fallthru
      _
    // Predicated region
    $region98: #{tpu_custom_call.1} parent=1 // pred_check
      _
    $region99: #{tpu_custom_call.1} parent=1 // pred_check_branch
      %1689 = sbr.rel (0) target = $region101
    $region100: #{tpu_custom_call.1} parent=1 // pred_region
      %1690 = dma.done [#allocation4], 32
    $region101: #{tpu_custom_call.1} parent=1 // pred_fallthru
      _
    %1691 = vsyncpa [#allocation3], 1
    %1692 = vsyncpa [#allocation6], 1
    %1693 = vsyncpa [#allocation9], 1
    %1694 = vsyncpa [#allocation12], 1
    %1695 = vsyncpa [#allocation4], 1

</llo_original>
